<compile_context>
chip_gen: v7x
topology: tpu7x:2x2x1
jax: 0.10.0
libtpu: 0.0.40
codegen_flags: <defaults>
</compile_context>

<pallas_src>
import functools

import jax
import jax.numpy as jnp
from jax.experimental import pallas as pl
from jax.experimental.pallas import tpu as pltpu


# ----------------------------------------------------------------------------
# Pallas kernel: conv1d(1->C,k3,p1)+ReLU, conv1d(C->C,k3,p1)+ReLU (im2col),
#                Linear->ReLU x3 (lin1 as per-position accumulation), Linear.
# All operands live fully in VMEM (no grid).
# ----------------------------------------------------------------------------
def _qnet_kernel(featT_ref,   # (L, B)     f32  transposed concat'd features
                 conv_ref,    # (5, C)     f32  rows 0..2: conv1 taps, 3: b1, 4: b2
                 w2c_ref,     # (3C, C)    bf16 conv2 weight, im2col layout
                 W1_ref,      # (L, C, H)  bf16 lin1 weight, per-position slices
                 W234_ref,    # (3, H, H)  bf16 lin2, lin3, lin4 (lane-padded to H)
                 bias_ref,    # (4, H)     f32  bl1, bl2, bl3, bl4 (lane-padded)
                 out_ref):    # (B, O)     f32
    L, B = featT_ref.shape
    C = conv_ref.shape[1]
    H = bias_ref.shape[1]
    O = out_ref.shape[1]
    mm = W1_ref.dtype                       # matmul operand dtype (bf16)

    xT = featT_ref[...]                     # (L, B)  f32
    cp = conv_ref[...]                      # (5, C)  f32
    bp = bias_ref[...]                      # (4, H)  f32

    # ---- Conv1d(1 -> C, kernel=3, padding=1) + ReLU (VPU broadcast) ---------
    zrow = jnp.zeros((1, B), jnp.float32)
    xT_pad = jnp.concatenate([zrow, xT, zrow], axis=0)          # (L+2, B)
    h1 = jnp.broadcast_to(cp[3:4, :].reshape(1, 1, C), (L, B, C))
    for k in range(3):                                          # static unroll
        h1 = h1 + xT_pad[k:k + L, :][:, :, None] * cp[k:k + 1, :].reshape(1, 1, C)
    h1 = jnp.maximum(h1, 0.0)                                   # (L, B, C)

    # ---- Conv1d(C -> C, kernel=3, padding=1) + ReLU: one im2col matmul ------
    ztile = jnp.zeros((1, B, C), jnp.float32)
    h1_pad = jnp.concatenate([ztile, h1, ztile], axis=0)        # (L+2, B, C)
    taps = jnp.concatenate([h1_pad[k:k + L] for k in range(3)], axis=2)  # (L,B,3C)
    taps2d = taps.reshape(L * B, 3 * C).astype(mm)              # (L*B, 3C)
    h2 = jnp.dot(taps2d, w2c_ref[...],
                 preferred_element_type=jnp.float32)            # (L*B, C) f32
    h2 = jnp.maximum(h2 + cp[4:5, :], 0.0).astype(mm)           # rows = l*B + b

    # ---- Linear-1: per-position accumulating dots (no flatten relayout) -----
    acc = jnp.broadcast_to(bp[0:1, :], (B, H)).astype(jnp.float32)
    for l in range(L):                                          # static unroll
        acc = acc + jnp.dot(h2[l * B:(l + 1) * B, :], W1_ref[l],
                            preferred_element_type=jnp.float32)
    h = jnp.maximum(acc, 0.0)                                   # (B, H) f32

    # ---- Linear-2 / Linear-3 / Linear-4 (lin4 lane-padded, sliced at end) ---
    h = jnp.maximum(jnp.dot(h.astype(mm), W234_ref[0],
                            preferred_element_type=jnp.float32) + bp[1:2, :], 0.0)
    h = jnp.maximum(jnp.dot(h.astype(mm), W234_ref[1],
                            preferred_element_type=jnp.float32) + bp[2:3, :], 0.0)
    out = jnp.dot(h.astype(mm), W234_ref[2],
                  preferred_element_type=jnp.float32) + bp[3:4, :]
    out_ref[...] = out[:, :O].astype(out_ref.dtype)


# ----------------------------------------------------------------------------
# One-time parameter preparation (hoisted out of the forward call path).
# Converts PyTorch-layout params to packed kernel-layout operands.
# ----------------------------------------------------------------------------
def prepare_params(params, matmul_dtype=jnp.bfloat16):
    C = params["conv1_w"].shape[0]
    H = params["lin1_w"].shape[0]
    O = params["lin4_w"].shape[0]
    conv_out_dim = params["lin1_w"].shape[1]
    L = conv_out_dim // C
    assert O <= H, "output head packing requires output_dim <= hidden_size"

    # conv1 weight tap-major (3, C) + conv1/conv2 biases packed into one buffer.
    w1c = jnp.transpose(params["conv1_w"][:, 0, :], (1, 0))            # (3, C)
    conv_pack = jnp.concatenate(
        [w1c,
         params["conv1_b"].reshape(1, C),
         params["conv2_b"].reshape(1, C)], axis=0).astype(jnp.float32)  # (5, C)

    # conv2 weight in im2col layout: row k*C + cin, col cout.
    w2c = jnp.transpose(params["conv2_w"], (2, 1, 0)).reshape(3 * C, C)
    w2c = w2c.astype(matmul_dtype)                                      # (3C, C)

    # PyTorch flatten of (B, C, L) is channel-major (idx = c*L + l); keep W1 as
    # a (L, C, H) stack so the kernel's per-position accumulation matches it.
    W1_3d = (params["lin1_w"].T.reshape(C, L, H)
             .transpose(1, 0, 2).astype(matmul_dtype))                  # (L, C, H)

    # lin2 / lin3 / lin4 stacked; lin4 lane-padded from O to H with zeros.
    W4_pad = jnp.zeros((H, H), params["lin4_w"].dtype).at[:, :O].set(
        params["lin4_w"].T)
    W234 = jnp.stack([params["lin2_w"].T, params["lin3_w"].T, W4_pad],
                     axis=0).astype(matmul_dtype)                       # (3, H, H)

    b4_pad = jnp.zeros((H,), jnp.float32).at[:O].set(params["lin4_b"])
    bias_pack = jnp.stack(
        [params["lin1_b"], params["lin2_b"], params["lin3_b"], b4_pad],
        axis=0).astype(jnp.float32)                                     # (4, H)

    return {
        "passenger_embedding": params["passenger_embedding"],
        "destination_embedding": params["destination_embedding"],
        "conv_pack": conv_pack,
        "w2c": w2c,
        "W1_3d": W1_3d,
        "W234": W234,
        "bias_pack": bias_pack,
    }


# ----------------------------------------------------------------------------
# Forward: embedding gather / concat glue + a single gridless pallas_call.
# ----------------------------------------------------------------------------
@functools.partial(jax.jit, static_argnames=("out_dim",))
def qnetwork_forward(x, kparams, *, out_dim):
    B = x.shape[0]
    passenger_idx = x[:, 2].astype(jnp.int32)
    dest_idx = x[:, 3].astype(jnp.int32)
    p_emb = jnp.take(kparams["passenger_embedding"], passenger_idx, axis=0)
    d_emb = jnp.take(kparams["destination_embedding"], dest_idx, axis=0)
    other = jnp.concatenate([x[:, :2], x[:, 4:]], axis=1)
    feat = jnp.concatenate([other, p_emb, d_emb], axis=1)               # (B, L)
    feat_t = feat.T.astype(jnp.float32)                                 # (L, B)

    L, C, H = kparams["W1_3d"].shape
    operands = (feat_t, kparams["conv_pack"], kparams["w2c"],
                kparams["W1_3d"], kparams["W234"], kparams["bias_pack"])

    flops = 2 * (3 * L * B * C                 # conv1 (VPU)
                 + (L * B) * (3 * C) * C       # conv2 im2col matmul
                 + B * (L * C) * H             # lin1
                 + 3 * B * H * H)              # lin2, lin3, lin4 (padded)
    bytes_accessed = (sum(op.size * op.dtype.itemsize for op in operands)
                      + B * out_dim * 4)
    cost = pl.CostEstimate(flops=flops, transcendentals=0,
                           bytes_accessed=bytes_accessed)

    vmem = pl.BlockSpec(memory_space=pltpu.MemorySpace.VMEM)
    return pl.pallas_call(
        _qnet_kernel,
        out_shape=jax.ShapeDtypeStruct((B, out_dim), jnp.float32),
        in_specs=[vmem] * 6,
        out_specs=vmem,
        cost_estimate=cost,
    )(*operands)


# ----------------------------------------------------------------------------
# Pure-JAX reference that mirrors the PyTorch semantics exactly (NCW conv,
# channel-major flatten, x @ W.T + b linears).  Used only for verification.
# ----------------------------------------------------------------------------
def qnetwork_reference(x, params):
    passenger_idx = x[:, 2].astype(jnp.int32)
    dest_idx = x[:, 3].astype(jnp.int32)
    p_emb = jnp.take(params["passenger_embedding"], passenger_idx, axis=0)
    d_emb = jnp.take(params["destination_embedding"], dest_idx, axis=0)
    other = jnp.concatenate([x[:, :2], x[:, 4:]], axis=1)
    feat = jnp.concatenate([other, p_emb, d_emb], axis=1)               # (B, L)
    B, L = feat.shape
    C = params["conv1_w"].shape[0]

    xp = jnp.pad(feat, ((0, 0), (1, 1)))
    taps = jnp.stack([xp[:, k:k + L] for k in range(3)], axis=1)        # (B, 3, L)
    h1 = jnp.einsum("ck,bkl->bcl", params["conv1_w"][:, 0, :], taps)
    h1 = jax.nn.relu(h1 + params["conv1_b"][None, :, None])             # (B, C, L)

    h1p = jnp.pad(h1, ((0, 0), (0, 0), (1, 1)))
    h2 = params["conv2_b"][None, :, None]
    for k in range(3):
        h2 = h2 + jnp.einsum("cd,bdl->bcl", params["conv2_w"][:, :, k],
                             h1p[:, :, k:k + L])
    h2 = jax.nn.relu(h2)                                                # (B, C, L)

    flat = h2.reshape(B, C * L)
    h = jax.nn.relu(flat @ params["lin1_w"].T + params["lin1_b"])
    h = jax.nn.relu(h @ params["lin2_w"].T + params["lin2_b"])
    h = jax.nn.relu(h @ params["lin3_w"].T + params["lin3_b"])
    return h @ params["lin4_w"].T + params["lin4_b"]


def init_params(key, input_dim, output_dim, hidden_size=128,
                num_passengers=5, embedding_dim=4, conv_channels=32):
    base_input = input_dim - 2 + 2 * embedding_dim
    conv_out_dim = conv_channels * base_input
    ks = jax.random.split(key, 16)
    s = 0.1
    n = jax.random.normal
    return {
        "passenger_embedding": n(ks[0], (num_passengers, embedding_dim), jnp.float32) * s,
        "destination_embedding": n(ks[1], (num_passengers - 1, embedding_dim), jnp.float32) * s,
        "conv1_w": n(ks[2], (conv_channels, 1, 3), jnp.float32) * s,
        "conv1_b": n(ks[3], (conv_channels,), jnp.float32) * s,
        "conv2_w": n(ks[4], (conv_channels, conv_channels, 3), jnp.float32) * s,
        "conv2_b": n(ks[5], (conv_channels,), jnp.float32) * s,
        "lin1_w": n(ks[6], (hidden_size, conv_out_dim), jnp.float32) * s,
        "lin1_b": n(ks[7], (hidden_size,), jnp.float32) * s,
        "lin2_w": n(ks[8], (hidden_size, hidden_size), jnp.float32) * s,
        "lin2_b": n(ks[9], (hidden_size,), jnp.float32) * s,
        "lin3_w": n(ks[10], (hidden_size, hidden_size), jnp.float32) * s,
        "lin3_b": n(ks[11], (hidden_size,), jnp.float32) * s,
        "lin4_w": n(ks[12], (output_dim, hidden_size), jnp.float32) * s,
        "lin4_b": n(ks[13], (output_dim,), jnp.float32) * s,
    }


if __name__ == "__main__":
    B, INPUT_DIM, OUTPUT_DIM = 8, 6, 6          # Taxi-style state / 6 actions
    NUM_PASSENGERS, EMB_DIM, CONV_CH, HIDDEN = 5, 4, 32, 128

    key = jax.random.PRNGKey(0)
    kp_key, kx1, kx2, kx3 = jax.random.split(key, 4)
    params = init_params(kp_key, INPUT_DIM, OUTPUT_DIM, HIDDEN,
                         NUM_PASSENGERS, EMB_DIM, CONV_CH)

    # One-time (hoisted) weight layout conversion + packing.
    kparams = prepare_params(params)

    # Build input: cols 2 and 3 hold integer-valued indices (as floats).
    cont_a = jax.random.uniform(kx1, (B, 2), jnp.float32)
    pidx = jax.random.randint(kx2, (B,), 0, NUM_PASSENGERS).astype(jnp.float32)
    didx = jax.random.randint(kx3, (B,), 0, NUM_PASSENGERS - 1).astype(jnp.float32)
    cont_b = jax.random.uniform(jax.random.fold_in(kx1, 7),
                                (B, INPUT_DIM - 4), jnp.float32)
    x = jnp.concatenate([cont_a, pidx[:, None], didx[:, None], cont_b], axis=1)

    out = qnetwork_forward(x, kparams, out_dim=OUTPUT_DIM)
    out = jax.block_until_ready(out)

    ref = jax.block_until_ready(qnetwork_reference(x, params))
    assert out.shape == (B, OUTPUT_DIM)
    # Tolerance loosened vs the pure-f32 version because matmul operands are bf16.
    assert jnp.allclose(out, ref, rtol=2e-2, atol=2e-2), (out, ref)

    print("KERNEL_OK")
</pallas_src>

<mosaic_0001>
module attributes {stable_mosaic.version = 11 : i64} {
  func.func @_qnet_kernel(%arg0: memref<12x8xf32, #tpu.memory_space<vmem>>, %arg1: memref<5x32xf32, #tpu.memory_space<vmem>>, %arg2: memref<96x32xbf16, #tpu.memory_space<vmem>>, %arg3: memref<12x32x128xbf16, #tpu.memory_space<vmem>>, %arg4: memref<3x128x128xbf16, #tpu.memory_space<vmem>>, %arg5: memref<4x128xf32, #tpu.memory_space<vmem>>, %arg6: memref<8x6xf32, #tpu.memory_space<vmem>>) attributes {dimension_semantics = [], scalar_prefetch = 0 : i64, scratch_operands = 0 : i64, tpu.core_type = #tpu.core_type<tc>} {
    %c0 = arith.constant 0 : index
    %c0_0 = arith.constant 0 : index
    %0 = vector.load %arg0[%c0, %c0_0] : memref<12x8xf32, #tpu.memory_space<vmem>>, vector<12x8xf32>
    %c0_1 = arith.constant 0 : index
    %c0_2 = arith.constant 0 : index
    %1 = vector.load %arg1[%c0_1, %c0_2] : memref<5x32xf32, #tpu.memory_space<vmem>>, vector<5x32xf32>
    %c0_3 = arith.constant 0 : index
    %c0_4 = arith.constant 0 : index
    %2 = vector.load %arg5[%c0_3, %c0_4] : memref<4x128xf32, #tpu.memory_space<vmem>>, vector<4x128xf32>
    %cst = arith.constant 0.000000e+00 : f32
    %3 = vector.broadcast %cst : f32 to vector<1x8xf32>
    %4 = tpu.concatenate %3, %0, %3 in 0 : vector<1x8xf32>, vector<12x8xf32>, vector<1x8xf32> -> vector<14x8xf32>
    %5 = vector.extract_strided_slice %1 {offsets = [3, 0], sizes = [1, 32], strides = [1, 1]} : vector<5x32xf32> to vector<1x32xf32>
    %6 = vector.shape_cast %5 : vector<1x32xf32> to vector<1x1x32xf32>
    %7 = vector.shape_cast %6 : vector<1x1x32xf32> to vector<1x1x32xf32>
    %8 = vector.broadcast %7 : vector<1x1x32xf32> to vector<12x8x32xf32>
    %9 = vector.extract_strided_slice %4 {offsets = [0, 0], sizes = [12, 8], strides = [1, 1]} : vector<14x8xf32> to vector<12x8xf32>
    %10 = vector.shape_cast %9 : vector<12x8xf32> to vector<12x8x1xf32>
    %11 = vector.extract_strided_slice %1 {offsets = [0, 0], sizes = [1, 32], strides = [1, 1]} : vector<5x32xf32> to vector<1x32xf32>
    %12 = vector.shape_cast %11 : vector<1x32xf32> to vector<1x1x32xf32>
    %13 = vector.broadcast %10 : vector<12x8x1xf32> to vector<12x8x32xf32>
    %14 = vector.broadcast %12 : vector<1x1x32xf32> to vector<12x8x32xf32>
    %15 = arith.mulf %13, %14 : vector<12x8x32xf32>
    %16 = arith.addf %8, %15 : vector<12x8x32xf32>
    %17 = vector.extract_strided_slice %4 {offsets = [1, 0], sizes = [12, 8], strides = [1, 1]} : vector<14x8xf32> to vector<12x8xf32>
    %18 = vector.shape_cast %17 : vector<12x8xf32> to vector<12x8x1xf32>
    %19 = vector.extract_strided_slice %1 {offsets = [1, 0], sizes = [1, 32], strides = [1, 1]} : vector<5x32xf32> to vector<1x32xf32>
    %20 = vector.shape_cast %19 : vector<1x32xf32> to vector<1x1x32xf32>
    %21 = vector.broadcast %18 : vector<12x8x1xf32> to vector<12x8x32xf32>
    %22 = vector.broadcast %20 : vector<1x1x32xf32> to vector<12x8x32xf32>
    %23 = arith.mulf %21, %22 : vector<12x8x32xf32>
    %24 = arith.addf %16, %23 : vector<12x8x32xf32>
    %25 = vector.extract_strided_slice %4 {offsets = [2, 0], sizes = [12, 8], strides = [1, 1]} : vector<14x8xf32> to vector<12x8xf32>
    %26 = vector.shape_cast %25 : vector<12x8xf32> to vector<12x8x1xf32>
    %27 = vector.extract_strided_slice %1 {offsets = [2, 0], sizes = [1, 32], strides = [1, 1]} : vector<5x32xf32> to vector<1x32xf32>
    %28 = vector.shape_cast %27 : vector<1x32xf32> to vector<1x1x32xf32>
    %29 = vector.broadcast %26 : vector<12x8x1xf32> to vector<12x8x32xf32>
    %30 = vector.broadcast %28 : vector<1x1x32xf32> to vector<12x8x32xf32>
    %31 = arith.mulf %29, %30 : vector<12x8x32xf32>
    %32 = arith.addf %24, %31 : vector<12x8x32xf32>
    %cst_5 = arith.constant 0.000000e+00 : f32
    %33 = vector.broadcast %cst_5 : f32 to vector<12x8x32xf32>
    %34 = arith.maximumf %32, %33 : vector<12x8x32xf32>
    %cst_6 = arith.constant 0.000000e+00 : f32
    %35 = vector.broadcast %cst_6 : f32 to vector<1x8x32xf32>
    %36 = tpu.concatenate %35, %34, %35 in 0 : vector<1x8x32xf32>, vector<12x8x32xf32>, vector<1x8x32xf32> -> vector<14x8x32xf32>
    %37 = vector.extract_strided_slice %36 {offsets = [0, 0, 0], sizes = [12, 8, 32], strides = [1, 1, 1]} : vector<14x8x32xf32> to vector<12x8x32xf32>
    %38 = vector.extract_strided_slice %36 {offsets = [1, 0, 0], sizes = [12, 8, 32], strides = [1, 1, 1]} : vector<14x8x32xf32> to vector<12x8x32xf32>
    %39 = vector.extract_strided_slice %36 {offsets = [2, 0, 0], sizes = [12, 8, 32], strides = [1, 1, 1]} : vector<14x8x32xf32> to vector<12x8x32xf32>
    %40 = tpu.concatenate %37, %38, %39 in 2 : vector<12x8x32xf32>, vector<12x8x32xf32>, vector<12x8x32xf32> -> vector<12x8x96xf32>
    %41 = vector.shape_cast %40 : vector<12x8x96xf32> to vector<96x96xf32>
    %42 = arith.truncf %41 : vector<96x96xf32> to vector<96x96xbf16>
    %c0_7 = arith.constant 0 : index
    %c0_8 = arith.constant 0 : index
    %43 = vector.load %arg2[%c0_7, %c0_8] : memref<96x32xbf16, #tpu.memory_space<vmem>>, vector<96x32xbf16>
    %cst_9 = arith.constant dense<0.000000e+00> : vector<96x32xf32>
    %44 = tpu.matmul %42, %43, %cst_9 {dimension_numbers = #tpu.dot_dimension_numbers<[1], [0], [0], [1], [0, 0, 1, 1], [], []>} : vector<96x96xbf16>, vector<96x32xbf16>, vector<96x32xf32> -> vector<96x32xf32>
    %45 = vector.extract_strided_slice %1 {offsets = [4, 0], sizes = [1, 32], strides = [1, 1]} : vector<5x32xf32> to vector<1x32xf32>
    %46 = vector.broadcast %45 : vector<1x32xf32> to vector<96x32xf32>
    %47 = arith.addf %44, %46 : vector<96x32xf32>
    %cst_10 = arith.constant 0.000000e+00 : f32
    %48 = vector.broadcast %cst_10 : f32 to vector<96x32xf32>
    %49 = arith.maximumf %47, %48 : vector<96x32xf32>
    %50 = arith.truncf %49 : vector<96x32xf32> to vector<96x32xbf16>
    %51 = vector.extract_strided_slice %2 {offsets = [0, 0], sizes = [1, 128], strides = [1, 1]} : vector<4x128xf32> to vector<1x128xf32>
    %52 = vector.shape_cast %51 : vector<1x128xf32> to vector<1x128xf32>
    %53 = vector.broadcast %52 : vector<1x128xf32> to vector<8x128xf32>
    %54 = vector.extract_strided_slice %50 {offsets = [0, 0], sizes = [8, 32], strides = [1, 1]} : vector<96x32xbf16> to vector<8x32xbf16>
    %c0_11 = arith.constant 0 : index
    %c0_12 = arith.constant 0 : index
    %c0_13 = arith.constant 0 : index
    %55 = vector.load %arg3[%c0_11, %c0_12, %c0_13] : memref<12x32x128xbf16, #tpu.memory_space<vmem>>, vector<1x32x128xbf16>
    %56 = vector.shape_cast %55 : vector<1x32x128xbf16> to vector<32x128xbf16>
    %cst_14 = arith.constant dense<0.000000e+00> : vector<8x128xf32>
    %57 = tpu.matmul %54, %56, %cst_14 {dimension_numbers = #tpu.dot_dimension_numbers<[1], [0], [0], [1], [0, 0, 1, 1], [], []>} : vector<8x32xbf16>, vector<32x128xbf16>, vector<8x128xf32> -> vector<8x128xf32>
    %58 = arith.addf %53, %57 : vector<8x128xf32>
    %59 = vector.extract_strided_slice %50 {offsets = [8, 0], sizes = [8, 32], strides = [1, 1]} : vector<96x32xbf16> to vector<8x32xbf16>
    %c1 = arith.constant 1 : index
    %c0_15 = arith.constant 0 : index
    %c0_16 = arith.constant 0 : index
    %60 = vector.load %arg3[%c1, %c0_15, %c0_16] : memref<12x32x128xbf16, #tpu.memory_space<vmem>>, vector<1x32x128xbf16>
    %61 = vector.shape_cast %60 : vector<1x32x128xbf16> to vector<32x128xbf16>
    %cst_17 = arith.constant dense<0.000000e+00> : vector<8x128xf32>
    %62 = tpu.matmul %59, %61, %cst_17 {dimension_numbers = #tpu.dot_dimension_numbers<[1], [0], [0], [1], [0, 0, 1, 1], [], []>} : vector<8x32xbf16>, vector<32x128xbf16>, vector<8x128xf32> -> vector<8x128xf32>
    %63 = arith.addf %58, %62 : vector<8x128xf32>
    %64 = vector.extract_strided_slice %50 {offsets = [16, 0], sizes = [8, 32], strides = [1, 1]} : vector<96x32xbf16> to vector<8x32xbf16>
    %c2 = arith.constant 2 : index
    %c0_18 = arith.constant 0 : index
    %c0_19 = arith.constant 0 : index
    %65 = vector.load %arg3[%c2, %c0_18, %c0_19] : memref<12x32x128xbf16, #tpu.memory_space<vmem>>, vector<1x32x128xbf16>
    %66 = vector.shape_cast %65 : vector<1x32x128xbf16> to vector<32x128xbf16>
    %cst_20 = arith.constant dense<0.000000e+00> : vector<8x128xf32>
    %67 = tpu.matmul %64, %66, %cst_20 {dimension_numbers = #tpu.dot_dimension_numbers<[1], [0], [0], [1], [0, 0, 1, 1], [], []>} : vector<8x32xbf16>, vector<32x128xbf16>, vector<8x128xf32> -> vector<8x128xf32>
    %68 = arith.addf %63, %67 : vector<8x128xf32>
    %69 = vector.extract_strided_slice %50 {offsets = [24, 0], sizes = [8, 32], strides = [1, 1]} : vector<96x32xbf16> to vector<8x32xbf16>
    %c3 = arith.constant 3 : index
    %c0_21 = arith.constant 0 : index
    %c0_22 = arith.constant 0 : index
    %70 = vector.load %arg3[%c3, %c0_21, %c0_22] : memref<12x32x128xbf16, #tpu.memory_space<vmem>>, vector<1x32x128xbf16>
    %71 = vector.shape_cast %70 : vector<1x32x128xbf16> to vector<32x128xbf16>
    %cst_23 = arith.constant dense<0.000000e+00> : vector<8x128xf32>
    %72 = tpu.matmul %69, %71, %cst_23 {dimension_numbers = #tpu.dot_dimension_numbers<[1], [0], [0], [1], [0, 0, 1, 1], [], []>} : vector<8x32xbf16>, vector<32x128xbf16>, vector<8x128xf32> -> vector<8x128xf32>
    %73 = arith.addf %68, %72 : vector<8x128xf32>
    %74 = vector.extract_strided_slice %50 {offsets = [32, 0], sizes = [8, 32], strides = [1, 1]} : vector<96x32xbf16> to vector<8x32xbf16>
    %c4 = arith.constant 4 : index
    %c0_24 = arith.constant 0 : index
    %c0_25 = arith.constant 0 : index
    %75 = vector.load %arg3[%c4, %c0_24, %c0_25] : memref<12x32x128xbf16, #tpu.memory_space<vmem>>, vector<1x32x128xbf16>
    %76 = vector.shape_cast %75 : vector<1x32x128xbf16> to vector<32x128xbf16>
    %cst_26 = arith.constant dense<0.000000e+00> : vector<8x128xf32>
    %77 = tpu.matmul %74, %76, %cst_26 {dimension_numbers = #tpu.dot_dimension_numbers<[1], [0], [0], [1], [0, 0, 1, 1], [], []>} : vector<8x32xbf16>, vector<32x128xbf16>, vector<8x128xf32> -> vector<8x128xf32>
    %78 = arith.addf %73, %77 : vector<8x128xf32>
    %79 = vector.extract_strided_slice %50 {offsets = [40, 0], sizes = [8, 32], strides = [1, 1]} : vector<96x32xbf16> to vector<8x32xbf16>
    %c5 = arith.constant 5 : index
    %c0_27 = arith.constant 0 : index
    %c0_28 = arith.constant 0 : index
    %80 = vector.load %arg3[%c5, %c0_27, %c0_28] : memref<12x32x128xbf16, #tpu.memory_space<vmem>>, vector<1x32x128xbf16>
    %81 = vector.shape_cast %80 : vector<1x32x128xbf16> to vector<32x128xbf16>
    %cst_29 = arith.constant dense<0.000000e+00> : vector<8x128xf32>
    %82 = tpu.matmul %79, %81, %cst_29 {dimension_numbers = #tpu.dot_dimension_numbers<[1], [0], [0], [1], [0, 0, 1, 1], [], []>} : vector<8x32xbf16>, vector<32x128xbf16>, vector<8x128xf32> -> vector<8x128xf32>
    %83 = arith.addf %78, %82 : vector<8x128xf32>
    %84 = vector.extract_strided_slice %50 {offsets = [48, 0], sizes = [8, 32], strides = [1, 1]} : vector<96x32xbf16> to vector<8x32xbf16>
    %c6 = arith.constant 6 : index
    %c0_30 = arith.constant 0 : index
    %c0_31 = arith.constant 0 : index
    %85 = vector.load %arg3[%c6, %c0_30, %c0_31] : memref<12x32x128xbf16, #tpu.memory_space<vmem>>, vector<1x32x128xbf16>
    %86 = vector.shape_cast %85 : vector<1x32x128xbf16> to vector<32x128xbf16>
    %cst_32 = arith.constant dense<0.000000e+00> : vector<8x128xf32>
    %87 = tpu.matmul %84, %86, %cst_32 {dimension_numbers = #tpu.dot_dimension_numbers<[1], [0], [0], [1], [0, 0, 1, 1], [], []>} : vector<8x32xbf16>, vector<32x128xbf16>, vector<8x128xf32> -> vector<8x128xf32>
    %88 = arith.addf %83, %87 : vector<8x128xf32>
    %89 = vector.extract_strided_slice %50 {offsets = [56, 0], sizes = [8, 32], strides = [1, 1]} : vector<96x32xbf16> to vector<8x32xbf16>
    %c7 = arith.constant 7 : index
    %c0_33 = arith.constant 0 : index
    %c0_34 = arith.constant 0 : index
    %90 = vector.load %arg3[%c7, %c0_33, %c0_34] : memref<12x32x128xbf16, #tpu.memory_space<vmem>>, vector<1x32x128xbf16>
    %91 = vector.shape_cast %90 : vector<1x32x128xbf16> to vector<32x128xbf16>
    %cst_35 = arith.constant dense<0.000000e+00> : vector<8x128xf32>
    %92 = tpu.matmul %89, %91, %cst_35 {dimension_numbers = #tpu.dot_dimension_numbers<[1], [0], [0], [1], [0, 0, 1, 1], [], []>} : vector<8x32xbf16>, vector<32x128xbf16>, vector<8x128xf32> -> vector<8x128xf32>
    %93 = arith.addf %88, %92 : vector<8x128xf32>
    %94 = vector.extract_strided_slice %50 {offsets = [64, 0], sizes = [8, 32], strides = [1, 1]} : vector<96x32xbf16> to vector<8x32xbf16>
    %c8 = arith.constant 8 : index
    %c0_36 = arith.constant 0 : index
    %c0_37 = arith.constant 0 : index
    %95 = vector.load %arg3[%c8, %c0_36, %c0_37] : memref<12x32x128xbf16, #tpu.memory_space<vmem>>, vector<1x32x128xbf16>
    %96 = vector.shape_cast %95 : vector<1x32x128xbf16> to vector<32x128xbf16>
    %cst_38 = arith.constant dense<0.000000e+00> : vector<8x128xf32>
    %97 = tpu.matmul %94, %96, %cst_38 {dimension_numbers = #tpu.dot_dimension_numbers<[1], [0], [0], [1], [0, 0, 1, 1], [], []>} : vector<8x32xbf16>, vector<32x128xbf16>, vector<8x128xf32> -> vector<8x128xf32>
    %98 = arith.addf %93, %97 : vector<8x128xf32>
    %99 = vector.extract_strided_slice %50 {offsets = [72, 0], sizes = [8, 32], strides = [1, 1]} : vector<96x32xbf16> to vector<8x32xbf16>
    %c9 = arith.constant 9 : index
    %c0_39 = arith.constant 0 : index
    %c0_40 = arith.constant 0 : index
    %100 = vector.load %arg3[%c9, %c0_39, %c0_40] : memref<12x32x128xbf16, #tpu.memory_space<vmem>>, vector<1x32x128xbf16>
    %101 = vector.shape_cast %100 : vector<1x32x128xbf16> to vector<32x128xbf16>
    %cst_41 = arith.constant dense<0.000000e+00> : vector<8x128xf32>
    %102 = tpu.matmul %99, %101, %cst_41 {dimension_numbers = #tpu.dot_dimension_numbers<[1], [0], [0], [1], [0, 0, 1, 1], [], []>} : vector<8x32xbf16>, vector<32x128xbf16>, vector<8x128xf32> -> vector<8x128xf32>
    %103 = arith.addf %98, %102 : vector<8x128xf32>
    %104 = vector.extract_strided_slice %50 {offsets = [80, 0], sizes = [8, 32], strides = [1, 1]} : vector<96x32xbf16> to vector<8x32xbf16>
    %c10 = arith.constant 10 : index
    %c0_42 = arith.constant 0 : index
    %c0_43 = arith.constant 0 : index
    %105 = vector.load %arg3[%c10, %c0_42, %c0_43] : memref<12x32x128xbf16, #tpu.memory_space<vmem>>, vector<1x32x128xbf16>
    %106 = vector.shape_cast %105 : vector<1x32x128xbf16> to vector<32x128xbf16>
    %cst_44 = arith.constant dense<0.000000e+00> : vector<8x128xf32>
    %107 = tpu.matmul %104, %106, %cst_44 {dimension_numbers = #tpu.dot_dimension_numbers<[1], [0], [0], [1], [0, 0, 1, 1], [], []>} : vector<8x32xbf16>, vector<32x128xbf16>, vector<8x128xf32> -> vector<8x128xf32>
    %108 = arith.addf %103, %107 : vector<8x128xf32>
    %109 = vector.extract_strided_slice %50 {offsets = [88, 0], sizes = [8, 32], strides = [1, 1]} : vector<96x32xbf16> to vector<8x32xbf16>
    %c11 = arith.constant 11 : index
    %c0_45 = arith.constant 0 : index
    %c0_46 = arith.constant 0 : index
    %110 = vector.load %arg3[%c11, %c0_45, %c0_46] : memref<12x32x128xbf16, #tpu.memory_space<vmem>>, vector<1x32x128xbf16>
    %111 = vector.shape_cast %110 : vector<1x32x128xbf16> to vector<32x128xbf16>
    %cst_47 = arith.constant dense<0.000000e+00> : vector<8x128xf32>
    %112 = tpu.matmul %109, %111, %cst_47 {dimension_numbers = #tpu.dot_dimension_numbers<[1], [0], [0], [1], [0, 0, 1, 1], [], []>} : vector<8x32xbf16>, vector<32x128xbf16>, vector<8x128xf32> -> vector<8x128xf32>
    %113 = arith.addf %108, %112 : vector<8x128xf32>
    %cst_48 = arith.constant 0.000000e+00 : f32
    %114 = vector.broadcast %cst_48 : f32 to vector<8x128xf32>
    %115 = arith.maximumf %113, %114 : vector<8x128xf32>
    %116 = arith.truncf %115 : vector<8x128xf32> to vector<8x128xbf16>
    %c0_49 = arith.constant 0 : index
    %c0_50 = arith.constant 0 : index
    %c0_51 = arith.constant 0 : index
    %117 = vector.load %arg4[%c0_49, %c0_50, %c0_51] : memref<3x128x128xbf16, #tpu.memory_space<vmem>>, vector<1x128x128xbf16>
    %118 = vector.shape_cast %117 : vector<1x128x128xbf16> to vector<128x128xbf16>
    %cst_52 = arith.constant dense<0.000000e+00> : vector<8x128xf32>
    %119 = tpu.matmul %116, %118, %cst_52 {dimension_numbers = #tpu.dot_dimension_numbers<[1], [0], [0], [1], [0, 0, 1, 1], [], []>} : vector<8x128xbf16>, vector<128x128xbf16>, vector<8x128xf32> -> vector<8x128xf32>
    %120 = vector.extract_strided_slice %2 {offsets = [1, 0], sizes = [1, 128], strides = [1, 1]} : vector<4x128xf32> to vector<1x128xf32>
    %121 = vector.broadcast %120 : vector<1x128xf32> to vector<8x128xf32>
    %122 = arith.addf %119, %121 : vector<8x128xf32>
    %cst_53 = arith.constant 0.000000e+00 : f32
    %123 = vector.broadcast %cst_53 : f32 to vector<8x128xf32>
    %124 = arith.maximumf %122, %123 : vector<8x128xf32>
    %125 = arith.truncf %124 : vector<8x128xf32> to vector<8x128xbf16>
    %c1_54 = arith.constant 1 : index
    %c0_55 = arith.constant 0 : index
    %c0_56 = arith.constant 0 : index
    %126 = vector.load %arg4[%c1_54, %c0_55, %c0_56] : memref<3x128x128xbf16, #tpu.memory_space<vmem>>, vector<1x128x128xbf16>
    %127 = vector.shape_cast %126 : vector<1x128x128xbf16> to vector<128x128xbf16>
    %cst_57 = arith.constant dense<0.000000e+00> : vector<8x128xf32>
    %128 = tpu.matmul %125, %127, %cst_57 {dimension_numbers = #tpu.dot_dimension_numbers<[1], [0], [0], [1], [0, 0, 1, 1], [], []>} : vector<8x128xbf16>, vector<128x128xbf16>, vector<8x128xf32> -> vector<8x128xf32>
    %129 = vector.extract_strided_slice %2 {offsets = [2, 0], sizes = [1, 128], strides = [1, 1]} : vector<4x128xf32> to vector<1x128xf32>
    %130 = vector.broadcast %129 : vector<1x128xf32> to vector<8x128xf32>
    %131 = arith.addf %128, %130 : vector<8x128xf32>
    %cst_58 = arith.constant 0.000000e+00 : f32
    %132 = vector.broadcast %cst_58 : f32 to vector<8x128xf32>
    %133 = arith.maximumf %131, %132 : vector<8x128xf32>
    %134 = arith.truncf %133 : vector<8x128xf32> to vector<8x128xbf16>
    %c2_59 = arith.constant 2 : index
    %c0_60 = arith.constant 0 : index
    %c0_61 = arith.constant 0 : index
    %135 = vector.load %arg4[%c2_59, %c0_60, %c0_61] : memref<3x128x128xbf16, #tpu.memory_space<vmem>>, vector<1x128x128xbf16>
    %136 = vector.shape_cast %135 : vector<1x128x128xbf16> to vector<128x128xbf16>
    %cst_62 = arith.constant dense<0.000000e+00> : vector<8x128xf32>
    %137 = tpu.matmul %134, %136, %cst_62 {dimension_numbers = #tpu.dot_dimension_numbers<[1], [0], [0], [1], [0, 0, 1, 1], [], []>} : vector<8x128xbf16>, vector<128x128xbf16>, vector<8x128xf32> -> vector<8x128xf32>
    %138 = vector.extract_strided_slice %2 {offsets = [3, 0], sizes = [1, 128], strides = [1, 1]} : vector<4x128xf32> to vector<1x128xf32>
    %139 = vector.broadcast %138 : vector<1x128xf32> to vector<8x128xf32>
    %140 = arith.addf %137, %139 : vector<8x128xf32>
    %141 = vector.extract_strided_slice %140 {offsets = [0, 0], sizes = [8, 6], strides = [1, 1]} : vector<8x128xf32> to vector<8x6xf32>
    %c0_63 = arith.constant 0 : index
    %c0_64 = arith.constant 0 : index
    %142 = vector.load %arg6[%c0_63, %c0_64] : memref<8x6xf32, #tpu.memory_space<vmem>>, vector<8x6xf32>
    tpu.vector_store %arg6[%c0_63, %c0_64], %141 {strides = array<i32>} : memref<8x6xf32, #tpu.memory_space<vmem>>, vector<8x6xf32>,
    return
  }
}

</mosaic_0001>

<llo_original>
// kernel: qnetwork_forward.1
$region0: #{qnetwork_forward.1}
  #allocation0 [shape = 'u32[]', space=smem, size = 0x4, offset = 0x4, fixed_abs, tag = 'smem constant byte address 0x4 - core index']
  #allocation1 [shape = 'u32[144,128]{1,0:T(1,128)}', space=vmem, size = 0x12000, scoped, tag = 'internal scratch']
  %s0 = inlined_call_operand.vmem [shape: f32[12,8], index: 0, kind: input, shape index: {}]
  %s1 = inlined_call_operand.vmem [shape: f32[5,32], index: 1, kind: input, shape index: {}]
  %s2 = inlined_call_operand.vmem [shape: bf16[96,32], index: 2, kind: input, shape index: {}]
  %s3 = inlined_call_operand.vmem [shape: bf16[12,32,128], index: 3, kind: input, shape index: {}]
  %s4 = inlined_call_operand.vmem [shape: bf16[3,128,128], index: 4, kind: input, shape index: {}]
  %s5 = inlined_call_operand.vmem [shape: f32[4,128], index: 5, kind: input, shape index: {}]
  %s6 = inlined_call_operand.hbm [shape: f32[8,6], index: 6, kind: output, shape index: {}]
  %s7 = sld [smem:[#allocation0]]
  $region34: #{qnetwork_forward.1} parent=0
    _
  %s9 = ssub.s32 1, %s7
  %s10 = scalar_select 0, %s9, %s7
  $region1: #{qnetwork_forward.1} parent=0
    #allocation2 [shape = 'u8[4096]{0}', space=vmem, size = 0x1000, scoped, tag = 'output window, operand 0, single buffered']
    #allocation3 [shape = 's32[1]{0}', space=sflag, size = 0x4, scoped, tag = 'scoped memory for qnetwork_forward.1']
    %11 = vsyncpa [#allocation3], 0
    // Predicated region
    $region2: #{qnetwork_forward.1} parent=1 // pred_check
      _
    $region3: #{qnetwork_forward.1} parent=1 // pred_check_branch
      %13 = sbr.rel (0) target = $region5
    $region4: #{qnetwork_forward.1} parent=1 // pred_region
      _
    $region5: #{qnetwork_forward.1} parent=1 // pred_fallthru
      _
    // Predicated region
    $region6: #{qnetwork_forward.1} parent=1 // pred_check
      _
    $region7: #{qnetwork_forward.1} parent=1 // pred_check_branch
      %15 = sbr.rel (0) target = $region9
    $region8: #{qnetwork_forward.1} parent=1 // pred_region
      _
    $region9: #{qnetwork_forward.1} parent=1 // pred_fallthru
      _
    // Predicated region
    $region10: #{qnetwork_forward.1} parent=1 // pred_check
      _
    $region11: #{qnetwork_forward.1} parent=1 // pred_check_branch
      %17 = sbr.rel (0) target = $region13
    $region12: #{qnetwork_forward.1} parent=1 // pred_region
      _
    $region13: #{qnetwork_forward.1} parent=1 // pred_fallthru
      _
    // Predicated region
    $region14: #{qnetwork_forward.1} parent=1 // pred_check
      _
    $region15: #{qnetwork_forward.1} parent=1 // pred_check_branch
      %19 = sbr.rel (0) target = $region17
    $region16: #{qnetwork_forward.1} parent=1 // pred_region
      _
    $region17: #{qnetwork_forward.1} parent=1 // pred_fallthru
      _
    // Predicated region
    $region18: #{qnetwork_forward.1} parent=1 // pred_check
      _
    $region19: #{qnetwork_forward.1} parent=1 // pred_check_branch
      %21 = sbr.rel (0) target = $region21
    $region20: #{qnetwork_forward.1} parent=1 // pred_region
      _
    $region21: #{qnetwork_forward.1} parent=1 // pred_fallthru
      _
    // Predicated region
    $region22: #{qnetwork_forward.1} parent=1 // pred_check
      _
    $region23: #{qnetwork_forward.1} parent=1 // pred_check_branch
      %23 = sbr.rel (0) target = $region25
    $region24: #{qnetwork_forward.1} parent=1 // pred_region
      _
    $region25: #{qnetwork_forward.1} parent=1 // pred_fallthru
      _
    %v25 = vld [vmem:[%s0] sm:$0xff]
    %v26 = vld [vmem:[%s0 + $0x8] sm:$0xf]
    %v27 = vld [vmem:[%s1] sm:$0x1f]
    %v28 = vld [vmem:[%s5] sm:$0xf]
    %vm31 = vcmask 1040384
    %v32 = vrot.slane %v25, 7
    %v33 = vrot.slane %v26, 7
    %v34 = vsel %vm31, %v32, %v33
    %v37 = vsel %vm31, 0.0, %v32
    %vm38 = vcmask 1044480
    %v39 = vsel %vm38, %v34, 0.0
    %v40 = vlaneseq
    %v41 = vshrl.u32 %v40, 7
    %v42 = vsub.s32 3, %v41
    %v43 = vrot.slane %v27, %v42
    %v44 = vlaneseq
    %v45 = vshrl.u32 %v44, 7
    %v46 = vsub.s32 0, %v45
    %v47 = vrot.slane %v37, %v46
    %49 = vbcast.lane.b32.xlu0 %v47, 256
    %v50 = vpop.permute.xlu0 %49
    %v51 = vlaneseq
    %v52 = vshrl.u32 %v51, 7
    %v53 = vsub.s32 1, %v52
    %v54 = vrot.slane %v37, %v53
    %56 = vbcast.lane.b32.xlu0 %v54, 256
    %v57 = vpop.permute.xlu0 %56
    %v58 = vlaneseq
    %v59 = vshrl.u32 %v58, 7
    %v60 = vsub.s32 2, %v59
    %v61 = vrot.slane %v37, %v60
    %63 = vbcast.lane.b32.xlu0 %v61, 256
    %v64 = vpop.permute.xlu0 %63
    %v65 = vlaneseq
    %v66 = vshrl.u32 %v65, 7
    %v67 = vsub.s32 3, %v66
    %v68 = vrot.slane %v37, %v67
    %70 = vbcast.lane.b32.xlu0 %v68, 256
    %v71 = vpop.permute.xlu0 %70
    %v72 = vlaneseq
    %v73 = vshrl.u32 %v72, 7
    %v74 = vsub.s32 4, %v73
    %v75 = vrot.slane %v37, %v74
    %77 = vbcast.lane.b32.xlu0 %v75, 256
    %v78 = vpop.permute.xlu0 %77
    %v79 = vlaneseq
    %v80 = vshrl.u32 %v79, 7
    %v81 = vsub.s32 5, %v80
    %v82 = vrot.slane %v37, %v81
    %84 = vbcast.lane.b32.xlu0 %v82, 256
    %v85 = vpop.permute.xlu0 %84
    %v86 = vlaneseq
    %v87 = vshrl.u32 %v86, 7
    %v88 = vsub.s32 6, %v87
    %v89 = vrot.slane %v37, %v88
    %91 = vbcast.lane.b32.xlu0 %v89, 256
    %v92 = vpop.permute.xlu0 %91
    %v93 = vlaneseq
    %v94 = vshrl.u32 %v93, 7
    %v95 = vsub.s32 7, %v94
    %v96 = vrot.slane %v37, %v95
    %98 = vbcast.lane.b32.xlu0 %v96, 256
    %v99 = vpop.permute.xlu0 %98
    %v100 = vlaneseq
    %v101 = vshrl.u32 %v100, 7
    %v102 = vsub.s32 0, %v101
    %v103 = vrot.slane %v39, %v102
    %105 = vbcast.lane.b32.xlu0 %v103, 256
    %v106 = vpop.permute.xlu0 %105
    %v107 = vlaneseq
    %v108 = vshrl.u32 %v107, 7
    %v109 = vsub.s32 1, %v108
    %v110 = vrot.slane %v39, %v109
    %112 = vbcast.lane.b32.xlu0 %v110, 256
    %v113 = vpop.permute.xlu0 %112
    %v114 = vlaneseq
    %v115 = vshrl.u32 %v114, 7
    %v116 = vsub.s32 2, %v115
    %v117 = vrot.slane %v39, %v116
    %119 = vbcast.lane.b32.xlu0 %v117, 256
    %v120 = vpop.permute.xlu0 %119
    %v121 = vlaneseq
    %v122 = vshrl.u32 %v121, 7
    %v123 = vsub.s32 3, %v122
    %v124 = vrot.slane %v39, %v123
    %126 = vbcast.lane.b32.xlu0 %v124, 256
    %v127 = vpop.permute.xlu0 %126
    %v128 = vlaneseq
    %v129 = vshrl.u32 %v128, 7
    %v130 = vsub.s32 0, %v129
    %v131 = vrot.slane %v27, %v130
    %v132 = vmul.f32 %v50, %v131
    %v133 = vmul.f32 %v57, %v131
    %v134 = vmul.f32 %v64, %v131
    %v135 = vmul.f32 %v71, %v131
    %v136 = vmul.f32 %v78, %v131
    %v137 = vmul.f32 %v85, %v131
    %v138 = vmul.f32 %v92, %v131
    %v139 = vmul.f32 %v99, %v131
    %v140 = vmul.f32 %v106, %v131
    %v141 = vmul.f32 %v113, %v131
    %v142 = vmul.f32 %v120, %v131
    %v143 = vmul.f32 %v127, %v131
    %v144 = vadd.f32 %v43, %v132
    %v145 = vadd.f32 %v43, %v133
    %v146 = vadd.f32 %v43, %v134
    %v147 = vadd.f32 %v43, %v135
    %v148 = vadd.f32 %v43, %v136
    %v149 = vadd.f32 %v43, %v137
    %v150 = vadd.f32 %v43, %v138
    %v151 = vadd.f32 %v43, %v139
    %v152 = vadd.f32 %v43, %v140
    %v153 = vadd.f32 %v43, %v141
    %v154 = vadd.f32 %v43, %v142
    %v155 = vadd.f32 %v43, %v143
    %v156 = vlaneseq
    %v157 = vshrl.u32 %v156, 7
    %v158 = vsub.s32 4, %v157
    %v159 = vrot.slane %v39, %v158
    %161 = vbcast.lane.b32.xlu0 %v159, 256
    %v162 = vpop.permute.xlu0 %161
    %v163 = vlaneseq
    %v164 = vshrl.u32 %v163, 7
    %v165 = vsub.s32 1, %v164
    %v166 = vrot.slane %v27, %v165
    %v167 = vmul.f32 %v57, %v166
    %v168 = vmul.f32 %v64, %v166
    %v169 = vmul.f32 %v71, %v166
    %v170 = vmul.f32 %v78, %v166
    %v171 = vmul.f32 %v85, %v166
    %v172 = vmul.f32 %v92, %v166
    %v173 = vmul.f32 %v99, %v166
    %v174 = vmul.f32 %v106, %v166
    %v175 = vmul.f32 %v113, %v166
    %v176 = vmul.f32 %v120, %v166
    %v177 = vmul.f32 %v127, %v166
    %v178 = vmul.f32 %v162, %v166
    %v179 = vadd.f32 %v144, %v167
    %v180 = vadd.f32 %v145, %v168
    %v181 = vadd.f32 %v146, %v169
    %v182 = vadd.f32 %v147, %v170
    %v183 = vadd.f32 %v148, %v171
    %v184 = vadd.f32 %v149, %v172
    %v185 = vadd.f32 %v150, %v173
    %v186 = vadd.f32 %v151, %v174
    %v187 = vadd.f32 %v152, %v175
    %v188 = vadd.f32 %v153, %v176
    %v189 = vadd.f32 %v154, %v177
    %v190 = vadd.f32 %v155, %v178
    %v191 = vlaneseq
    %v192 = vshrl.u32 %v191, 7
    %v193 = vsub.s32 5, %v192
    %v194 = vrot.slane %v39, %v193
    %196 = vbcast.lane.b32.xlu0 %v194, 256
    %v197 = vpop.permute.xlu0 %196
    %v198 = vlaneseq
    %v199 = vshrl.u32 %v198, 7
    %v200 = vsub.s32 2, %v199
    %v201 = vrot.slane %v27, %v200
    %v202 = vmul.f32 %v64, %v201
    %v203 = vmul.f32 %v71, %v201
    %v204 = vmul.f32 %v78, %v201
    %v205 = vmul.f32 %v85, %v201
    %v206 = vmul.f32 %v92, %v201
    %v207 = vmul.f32 %v99, %v201
    %v208 = vmul.f32 %v106, %v201
    %v209 = vmul.f32 %v113, %v201
    %v210 = vmul.f32 %v120, %v201
    %v211 = vmul.f32 %v127, %v201
    %v212 = vmul.f32 %v162, %v201
    %v213 = vmul.f32 %v197, %v201
    %v214 = vadd.f32 %v179, %v202
    %v215 = vadd.f32 %v180, %v203
    %v216 = vadd.f32 %v181, %v204
    %v217 = vadd.f32 %v182, %v205
    %v218 = vadd.f32 %v183, %v206
    %v219 = vadd.f32 %v184, %v207
    %v220 = vadd.f32 %v185, %v208
    %v221 = vadd.f32 %v186, %v209
    %v222 = vadd.f32 %v187, %v210
    %v223 = vadd.f32 %v188, %v211
    %v224 = vadd.f32 %v189, %v212
    %v225 = vadd.f32 %v190, %v213
    %v226 = vmax.f32 %v214, 0.0
    %v227 = vmax.f32 %v215, 0.0
    %v228 = vmax.f32 %v216, 0.0
    %v229 = vmax.f32 %v217, 0.0
    %v230 = vmax.f32 %v218, 0.0
    %v231 = vmax.f32 %v219, 0.0
    %v232 = vmax.f32 %v220, 0.0
    %v233 = vmax.f32 %v221, 0.0
    %v234 = vmax.f32 %v222, 0.0
    %v235 = vmax.f32 %v223, 0.0
    %v236 = vmax.f32 %v224, 0.0
    %v237 = vmax.f32 %v225, 0.0
    %250 = vrot.lane.b32.xlu0 %v226, 32
    %v251 = vpop.permute.xlu0 %250
    %252 = vrot.lane.b32.xlu0 %v227, 32
    %v253 = vpop.permute.xlu0 %252
    %254 = vrot.lane.b32.xlu0 %v228, 32
    %v255 = vpop.permute.xlu0 %254
    %256 = vrot.lane.b32.xlu0 %v229, 32
    %v257 = vpop.permute.xlu0 %256
    %258 = vrot.lane.b32.xlu0 %v230, 32
    %v259 = vpop.permute.xlu0 %258
    %260 = vrot.lane.b32.xlu0 %v231, 32
    %v261 = vpop.permute.xlu0 %260
    %262 = vrot.lane.b32.xlu0 %v232, 32
    %v263 = vpop.permute.xlu0 %262
    %264 = vrot.lane.b32.xlu0 %v233, 32
    %v265 = vpop.permute.xlu0 %264
    %266 = vrot.lane.b32.xlu0 %v234, 32
    %v267 = vpop.permute.xlu0 %266
    %268 = vrot.lane.b32.xlu0 %v235, 32
    %v269 = vpop.permute.xlu0 %268
    %270 = vrot.lane.b32.xlu0 %v236, 32
    %v271 = vpop.permute.xlu0 %270
    %272 = vrot.lane.b32.xlu0 %v237, 32
    %v273 = vpop.permute.xlu0 %272
    %287 = vrot.lane.b32.xlu0 %v227, 64
    %v288 = vpop.permute.xlu0 %287
    %289 = vrot.lane.b32.xlu0 %v228, 64
    %v290 = vpop.permute.xlu0 %289
    %291 = vrot.lane.b32.xlu0 %v229, 64
    %v292 = vpop.permute.xlu0 %291
    %293 = vrot.lane.b32.xlu0 %v230, 64
    %v294 = vpop.permute.xlu0 %293
    %295 = vrot.lane.b32.xlu0 %v231, 64
    %v296 = vpop.permute.xlu0 %295
    %297 = vrot.lane.b32.xlu0 %v232, 64
    %v298 = vpop.permute.xlu0 %297
    %299 = vrot.lane.b32.xlu0 %v233, 64
    %v300 = vpop.permute.xlu0 %299
    %301 = vrot.lane.b32.xlu0 %v234, 64
    %v302 = vpop.permute.xlu0 %301
    %303 = vrot.lane.b32.xlu0 %v235, 64
    %v304 = vpop.permute.xlu0 %303
    %305 = vrot.lane.b32.xlu0 %v236, 64
    %v306 = vpop.permute.xlu0 %305
    %307 = vrot.lane.b32.xlu0 %v237, 64
    %v308 = vpop.permute.xlu0 %307
    %309 = vrot.lane.b32.xlu0 0.0, 64
    %v310 = vpop.permute.xlu0 %309
    %vm323 = vcmask 261120
    %v324 = vsel %vm323, 0.0, %v251
    %v325 = vsel %vm323, %v226, %v253
    %v326 = vsel %vm323, %v227, %v255
    %v327 = vsel %vm323, %v228, %v257
    %v328 = vsel %vm323, %v229, %v259
    %v329 = vsel %vm323, %v230, %v261
    %v330 = vsel %vm323, %v231, %v263
    %v331 = vsel %vm323, %v232, %v265
    %v332 = vsel %vm323, %v233, %v267
    %v333 = vsel %vm323, %v234, %v269
    %v334 = vsel %vm323, %v235, %v271
    %v335 = vsel %vm323, %v236, %v273
    %vm336 = vcmask 523264
    %v337 = vsel %vm336, %v324, %v288
    %v338 = vsel %vm336, %v325, %v290
    %v339 = vsel %vm336, %v326, %v292
    %v340 = vsel %vm336, %v327, %v294
    %v341 = vsel %vm336, %v328, %v296
    %v342 = vsel %vm336, %v329, %v298
    %v343 = vsel %vm336, %v330, %v300
    %v344 = vsel %vm336, %v331, %v302
    %v345 = vsel %vm336, %v332, %v304
    %v346 = vsel %vm336, %v333, %v306
    %v347 = vsel %vm336, %v334, %v308
    %v348 = vsel %vm336, %v335, %v310
    %v349 = vpack.c.bf16 %v338, %v337
    %v350 = vpack.c.bf16 %v340, %v339
    %v351 = vpack.c.bf16 %v342, %v341
    %v352 = vpack.c.bf16 %v344, %v343
    %v353 = vpack.c.bf16 %v346, %v345
    %v354 = vpack.c.bf16 %v348, %v347
    %v355 = vld [vmem:[%s2] sm:$0xf]
    %v356 = vld [vmem:[%s2 + $0x4] sm:$0xf]
    %v357 = vld [vmem:[%s2 + $0x8] sm:$0xf]
    %v358 = vld [vmem:[%s2 + $0xc] sm:$0xf]
    %v359 = vld [vmem:[%s2 + $0x10] sm:$0xf]
    %v360 = vld [vmem:[%s2 + $0x14] sm:$0xf]
    %v361 = vld [vmem:[%s2 + $0x18] sm:$0xf]
    %v362 = vld [vmem:[%s2 + $0x1c] sm:$0xf]
    %v363 = vld [vmem:[%s2 + $0x20] sm:$0xf]
    %v364 = vld [vmem:[%s2 + $0x24] sm:$0xf]
    %v365 = vld [vmem:[%s2 + $0x28] sm:$0xf]
    %v366 = vld [vmem:[%s2 + $0x2c] sm:$0xf]
    %v367 = vlaneseq
    %v368 = vshrl.u32 %v367, 7
    %v369 = vsub.s32 4, %v368
    %v370 = vrot.slane %v27, %v369
    %v383 = vunpack.c.l.b16 %v355
    %v384 = vunpack.c.l.b16 %v356
    %v385 = vunpack.c.l.b16 %v357
    %v386 = vunpack.c.l.b16 %v358
    %v387 = vunpack.c.l.b16 %v359
    %v388 = vunpack.c.l.b16 %v360
    %v389 = vunpack.c.l.b16 %v361
    %v390 = vunpack.c.l.b16 %v362
    %v391 = vunpack.c.l.b16 %v363
    %v392 = vunpack.c.l.b16 %v364
    %v393 = vunpack.c.l.b16 %v365
    %v394 = vunpack.c.l.b16 %v366
    %v395 = vpack.c.b16 %v384, %v383
    %v396 = vpack.c.b16 %v386, %v385
    %v397 = vpack.c.b16 %v388, %v387
    %v398 = vpack.c.b16 %v390, %v389
    %v399 = vpack.c.b16 %v392, %v391
    %v400 = vpack.c.b16 %v394, %v393
    %vm407 = vcmask 785408
    %v409 = vsel %vm407, %v349, 0
    %v412 = vsel %vm407, %v350, 0
    %v415 = vsel %vm407, %v351, 0
    %v418 = vsel %vm407, %v352, 0
    %v421 = vsel %vm407, %v353, 0
    %v424 = vsel %vm407, %v354, 0
    %426 = vmatprep.subr.bf16.mxu0 0
    %427 = vmatpush1.bf16.msra.mxu0 %v395
    %428 = vmatprep.subr.bf16.mxu0 0
    %429 = vmatpush1.bf16.msra.mxu0 %v396
    %430 = vmatprep.subr.bf16.mxu0 0
    %431 = vmatpush1.bf16.msra.mxu0 %v397
    %432 = vmatprep.subr.bf16.mxu0 0
    %433 = vmatpush1.bf16.msra.mxu0 %v398
    %434 = vmatprep.subr.bf16.mxu0 0
    %435 = vmatpush1.bf16.msra.mxu0 %v399
    %436 = vmatprep.subr.bf16.mxu0 0
    %437 = vmatpush1.bf16.msra.mxu0 %v400
    %438 = vmatprep.subr.bf16.mxu0 0
    %439 = vmatpush1.bf16.msra.mxu0 0
    %440 = vmatprep.subr.bf16.mxu0 0
    %441 = vmatpush1.bf16.msra.mxu0 0
    %442 = vmatprep.subr.bf16.mxu0 0
    %443 = vmatpush1.bf16.msra.mxu0 0
    %444 = vmatprep.subr.bf16.mxu0 0
    %445 = vmatpush1.bf16.msra.mxu0 0
    %446 = vmatprep.subr.bf16.mxu0 0
    %447 = vmatpush1.bf16.msra.mxu0 0
    %448 = vmatprep.subr.bf16.mxu0 0
    %449 = vmatpush1.bf16.msra.mxu0 0
    %450 = vmatprep.subr.bf16.mxu0 0
    %451 = vmatpush1.bf16.msra.mxu0 0
    %452 = vmatprep.subr.bf16.mxu0 0
    %453 = vmatpush1.bf16.msra.mxu0 0
    %454 = vmatprep.subr.bf16.mxu0 0
    %455 = vmatpush1.bf16.msra.mxu0 0
    %456 = vmatprep.subr.bf16.mxu0 0
    %457 = vmatpush1.bf16.msra.mxu0 0
    %458 = vmatprep.mubr.bf16.mxu0 0
    %459 = vmatmul.mubr.bf16.gmra.mrb[0].mxu0 %v409
    %v460 = vpop.f32.mrb[0].mxu0
    %v461 = vadd.f32 %v370, %v460
    %v462 = vpop.f32.mrb[0].mxu0
    %v463 = vpop.f32.mrb[0].mxu0
    %v464 = vadd.f32 %v370, %v463
    %v465 = vpop.f32.mrb[0].mxu0
    %466 = vmatprep.mubr.bf16.mxu0 0
    %467 = vmatmul.mubr.bf16.gmra.mrb[0].mxu0 %v412
    %v468 = vpop.f32.mrb[0].mxu0
    %v469 = vadd.f32 %v370, %v468
    %v470 = vpop.f32.mrb[0].mxu0
    %v471 = vpop.f32.mrb[0].mxu0
    %v472 = vadd.f32 %v370, %v471
    %v473 = vpop.f32.mrb[0].mxu0
    %474 = vmatprep.mubr.bf16.mxu0 0
    %475 = vmatmul.mubr.bf16.gmra.mrb[0].mxu0 %v415
    %v476 = vpop.f32.mrb[0].mxu0
    %v477 = vadd.f32 %v370, %v476
    %v478 = vpop.f32.mrb[0].mxu0
    %v479 = vpop.f32.mrb[0].mxu0
    %v480 = vadd.f32 %v370, %v479
    %v481 = vpop.f32.mrb[0].mxu0
    %482 = vmatprep.mubr.bf16.mxu0 0
    %483 = vmatmul.mubr.bf16.gmra.mrb[0].mxu0 %v418
    %v484 = vpop.f32.mrb[0].mxu0
    %v485 = vadd.f32 %v370, %v484
    %v486 = vpop.f32.mrb[0].mxu0
    %v487 = vpop.f32.mrb[0].mxu0
    %v488 = vadd.f32 %v370, %v487
    %v489 = vpop.f32.mrb[0].mxu0
    %490 = vmatprep.mubr.bf16.mxu0 0
    %491 = vmatmul.mubr.bf16.gmra.mrb[0].mxu0 %v421
    %v492 = vpop.f32.mrb[0].mxu0
    %v493 = vadd.f32 %v370, %v492
    %v494 = vpop.f32.mrb[0].mxu0
    %v495 = vpop.f32.mrb[0].mxu0
    %v496 = vadd.f32 %v370, %v495
    %v497 = vpop.f32.mrb[0].mxu0
    %498 = vmatprep.mubr.bf16.mxu0 0
    %499 = vmatmul.mubr.bf16.gmra.mrb[0].mxu0 %v424
    %v500 = vpop.f32.mrb[0].mxu0
    %v501 = vadd.f32 %v370, %v500
    %v502 = vpop.f32.mrb[0].mxu0
    %v503 = vpop.f32.mrb[0].mxu0
    %v504 = vadd.f32 %v370, %v503
    %v505 = vpop.f32.mrb[0].mxu0
    %506 = vdwg.mxu0
    %v507 = vmax.f32 %v461, 0.0
    %v508 = vmax.f32 %v464, 0.0
    %v509 = vmax.f32 %v469, 0.0
    %v510 = vmax.f32 %v472, 0.0
    %v511 = vmax.f32 %v477, 0.0
    %v512 = vmax.f32 %v480, 0.0
    %v513 = vmax.f32 %v485, 0.0
    %v514 = vmax.f32 %v488, 0.0
    %v515 = vmax.f32 %v493, 0.0
    %v516 = vmax.f32 %v496, 0.0
    %v517 = vmax.f32 %v501, 0.0
    %v518 = vmax.f32 %v504, 0.0
    %v519 = vpack.c.bf16 %v508, %v507
    %v520 = vpack.c.bf16 %v510, %v509
    %v521 = vpack.c.bf16 %v512, %v511
    %v522 = vpack.c.bf16 %v514, %v513
    %v523 = vpack.c.bf16 %v516, %v515
    %v524 = vpack.c.bf16 %v518, %v517
    %v525 = vlaneseq
    %v526 = vshrl.u32 %v525, 7
    %v527 = vsub.s32 0, %v526
    %v528 = vrot.slane %v28, %v527
    %v529 = vld [vmem:[%s3] sm:$0xf]
    %v530 = vld [vmem:[%s3 + $0x4] sm:$0xf]
    %v531 = vld [vmem:[%s3 + $0x8] sm:$0xf]
    %v532 = vld [vmem:[%s3 + $0xc] sm:$0xf]
    %v537 = vunpack.c.l.b16 %v529
    %v538 = vunpack.c.l.b16 %v530
    %v539 = vunpack.c.l.b16 %v531
    %v540 = vunpack.c.l.b16 %v532
    %v541 = vpack.c.b16 %v538, %v537
    %v542 = vpack.c.b16 %v540, %v539
    %v546 = vsel %vm323, %v519, 0
    %548 = vmatprep.subr.bf16.mxu0 0
    %549 = vmatpush1.bf16.msra.mxu0 %v541
    %550 = vmatprep.subr.bf16.mxu0 0
    %551 = vmatpush1.bf16.msra.mxu0 %v542
    %552 = vmatprep.subr.bf16.mxu0 0
    %553 = vmatpush1.bf16.msra.mxu0 0
    %554 = vmatprep.subr.bf16.mxu0 0
    %555 = vmatpush1.bf16.msra.mxu0 0
    %556 = vmatprep.subr.bf16.mxu0 0
    %557 = vmatpush1.bf16.msra.mxu0 0
    %558 = vmatprep.subr.bf16.mxu0 0
    %559 = vmatpush1.bf16.msra.mxu0 0
    %560 = vmatprep.subr.bf16.mxu0 0
    %561 = vmatpush1.bf16.msra.mxu0 0
    %562 = vmatprep.subr.bf16.mxu0 0
    %563 = vmatpush1.bf16.msra.mxu0 0
    %564 = vmatprep.subr.bf16.mxu0 0
    %565 = vmatpush1.bf16.msra.mxu0 0
    %566 = vmatprep.subr.bf16.mxu0 0
    %567 = vmatpush1.bf16.msra.mxu0 0
    %568 = vmatprep.subr.bf16.mxu0 0
    %569 = vmatpush1.bf16.msra.mxu0 0
    %570 = vmatprep.subr.bf16.mxu0 0
    %571 = vmatpush1.bf16.msra.mxu0 0
    %572 = vmatprep.subr.bf16.mxu0 0
    %573 = vmatpush1.bf16.msra.mxu0 0
    %574 = vmatprep.subr.bf16.mxu0 0
    %575 = vmatpush1.bf16.msra.mxu0 0
    %576 = vmatprep.subr.bf16.mxu0 0
    %577 = vmatpush1.bf16.msra.mxu0 0
    %578 = vmatprep.subr.bf16.mxu0 0
    %579 = vmatpush1.bf16.msra.mxu0 0
    %580 = vmatprep.mubr.bf16.mxu0 0
    %581 = vmatmul.mubr.bf16.gmra.mrb[0].mxu0 %v546
    %v582 = vpop.f32.mrb[0].mxu0
    %v583 = vadd.f32 0.0, %v582
    %v584 = vpop.f32.mrb[0].mxu0
    %v585 = vpop.f32.mrb[0].mxu0
    %v586 = vpop.f32.mrb[0].mxu0
    %587 = vdwg.mxu0
    %v588 = vadd.f32 %v528, %v583
    %s589 = scalar_lea.vmem %s3, 16
    %v590 = vld [vmem:[%s589] sm:$0xf]
    %v591 = vld [vmem:[%s589 + $0x4] sm:$0xf]
    %v592 = vld [vmem:[%s589 + $0x8] sm:$0xf]
    %v593 = vld [vmem:[%s589 + $0xc] sm:$0xf]
    %v595 = vrot.slane %v519, 4
    %v600 = vunpack.c.l.b16 %v590
    %v601 = vunpack.c.l.b16 %v591
    %v602 = vunpack.c.l.b16 %v592
    %v603 = vunpack.c.l.b16 %v593
    %v604 = vpack.c.b16 %v601, %v600
    %v605 = vpack.c.b16 %v603, %v602
    %v609 = vsel %vm323, %v595, 0
    %611 = vmatprep.subr.bf16.mxu0 0
    %612 = vmatpush1.bf16.msra.mxu0 %v604
    %613 = vmatprep.subr.bf16.mxu0 0
    %614 = vmatpush1.bf16.msra.mxu0 %v605
    %615 = vmatprep.subr.bf16.mxu0 0
    %616 = vmatpush1.bf16.msra.mxu0 0
    %617 = vmatprep.subr.bf16.mxu0 0
    %618 = vmatpush1.bf16.msra.mxu0 0
    %619 = vmatprep.subr.bf16.mxu0 0
    %620 = vmatpush1.bf16.msra.mxu0 0
    %621 = vmatprep.subr.bf16.mxu0 0
    %622 = vmatpush1.bf16.msra.mxu0 0
    %623 = vmatprep.subr.bf16.mxu0 0
    %624 = vmatpush1.bf16.msra.mxu0 0
    %625 = vmatprep.subr.bf16.mxu0 0
    %626 = vmatpush1.bf16.msra.mxu0 0
    %627 = vmatprep.subr.bf16.mxu0 0
    %628 = vmatpush1.bf16.msra.mxu0 0
    %629 = vmatprep.subr.bf16.mxu0 0
    %630 = vmatpush1.bf16.msra.mxu0 0
    %631 = vmatprep.subr.bf16.mxu0 0
    %632 = vmatpush1.bf16.msra.mxu0 0
    %633 = vmatprep.subr.bf16.mxu0 0
    %634 = vmatpush1.bf16.msra.mxu0 0
    %635 = vmatprep.subr.bf16.mxu0 0
    %636 = vmatpush1.bf16.msra.mxu0 0
    %637 = vmatprep.subr.bf16.mxu0 0
    %638 = vmatpush1.bf16.msra.mxu0 0
    %639 = vmatprep.subr.bf16.mxu0 0
    %640 = vmatpush1.bf16.msra.mxu0 0
    %641 = vmatprep.subr.bf16.mxu0 0
    %642 = vmatpush1.bf16.msra.mxu0 0
    %643 = vmatprep.mubr.bf16.mxu0 0
    %644 = vmatmul.mubr.bf16.gmra.mrb[0].mxu0 %v609
    %v645 = vpop.f32.mrb[0].mxu0
    %v646 = vadd.f32 0.0, %v645
    %v647 = vpop.f32.mrb[0].mxu0
    %v648 = vpop.f32.mrb[0].mxu0
    %v649 = vpop.f32.mrb[0].mxu0
    %650 = vdwg.mxu0
    %v651 = vadd.f32 %v588, %v646
    %s652 = scalar_lea.vmem %s3, 32
    %v653 = vld [vmem:[%s652] sm:$0xf]
    %v654 = vld [vmem:[%s652 + $0x4] sm:$0xf]
    %v655 = vld [vmem:[%s652 + $0x8] sm:$0xf]
    %v656 = vld [vmem:[%s652 + $0xc] sm:$0xf]
    %v661 = vunpack.c.l.b16 %v653
    %v662 = vunpack.c.l.b16 %v654
    %v663 = vunpack.c.l.b16 %v655
    %v664 = vunpack.c.l.b16 %v656
    %v665 = vpack.c.b16 %v662, %v661
    %v666 = vpack.c.b16 %v664, %v663
    %v670 = vsel %vm323, %v520, 0
    %672 = vmatprep.subr.bf16.mxu0 0
    %673 = vmatpush1.bf16.msra.mxu0 %v665
    %674 = vmatprep.subr.bf16.mxu0 0
    %675 = vmatpush1.bf16.msra.mxu0 %v666
    %676 = vmatprep.subr.bf16.mxu0 0
    %677 = vmatpush1.bf16.msra.mxu0 0
    %678 = vmatprep.subr.bf16.mxu0 0
    %679 = vmatpush1.bf16.msra.mxu0 0
    %680 = vmatprep.subr.bf16.mxu0 0
    %681 = vmatpush1.bf16.msra.mxu0 0
    %682 = vmatprep.subr.bf16.mxu0 0
    %683 = vmatpush1.bf16.msra.mxu0 0
    %684 = vmatprep.subr.bf16.mxu0 0
    %685 = vmatpush1.bf16.msra.mxu0 0
    %686 = vmatprep.subr.bf16.mxu0 0
    %687 = vmatpush1.bf16.msra.mxu0 0
    %688 = vmatprep.subr.bf16.mxu0 0
    %689 = vmatpush1.bf16.msra.mxu0 0
    %690 = vmatprep.subr.bf16.mxu0 0
    %691 = vmatpush1.bf16.msra.mxu0 0
    %692 = vmatprep.subr.bf16.mxu0 0
    %693 = vmatpush1.bf16.msra.mxu0 0
    %694 = vmatprep.subr.bf16.mxu0 0
    %695 = vmatpush1.bf16.msra.mxu0 0
    %696 = vmatprep.subr.bf16.mxu0 0
    %697 = vmatpush1.bf16.msra.mxu0 0
    %698 = vmatprep.subr.bf16.mxu0 0
    %699 = vmatpush1.bf16.msra.mxu0 0
    %700 = vmatprep.subr.bf16.mxu0 0
    %701 = vmatpush1.bf16.msra.mxu0 0
    %702 = vmatprep.subr.bf16.mxu0 0
    %703 = vmatpush1.bf16.msra.mxu0 0
    %704 = vmatprep.mubr.bf16.mxu0 0
    %705 = vmatmul.mubr.bf16.gmra.mrb[0].mxu0 %v670
    %v706 = vpop.f32.mrb[0].mxu0
    %v707 = vadd.f32 0.0, %v706
    %v708 = vpop.f32.mrb[0].mxu0
    %v709 = vpop.f32.mrb[0].mxu0
    %v710 = vpop.f32.mrb[0].mxu0
    %711 = vdwg.mxu0
    %v712 = vadd.f32 %v651, %v707
    %s713 = scalar_lea.vmem %s3, 48
    %v714 = vld [vmem:[%s713] sm:$0xf]
    %v715 = vld [vmem:[%s713 + $0x4] sm:$0xf]
    %v716 = vld [vmem:[%s713 + $0x8] sm:$0xf]
    %v717 = vld [vmem:[%s713 + $0xc] sm:$0xf]
    %v719 = vrot.slane %v520, 4
    %v724 = vunpack.c.l.b16 %v714
    %v725 = vunpack.c.l.b16 %v715
    %v726 = vunpack.c.l.b16 %v716
    %v727 = vunpack.c.l.b16 %v717
    %v728 = vpack.c.b16 %v725, %v724
    %v729 = vpack.c.b16 %v727, %v726
    %v733 = vsel %vm323, %v719, 0
    %735 = vmatprep.subr.bf16.mxu0 0
    %736 = vmatpush1.bf16.msra.mxu0 %v728
    %737 = vmatprep.subr.bf16.mxu0 0
    %738 = vmatpush1.bf16.msra.mxu0 %v729
    %739 = vmatprep.subr.bf16.mxu0 0
    %740 = vmatpush1.bf16.msra.mxu0 0
    %741 = vmatprep.subr.bf16.mxu0 0
    %742 = vmatpush1.bf16.msra.mxu0 0
    %743 = vmatprep.subr.bf16.mxu0 0
    %744 = vmatpush1.bf16.msra.mxu0 0
    %745 = vmatprep.subr.bf16.mxu0 0
    %746 = vmatpush1.bf16.msra.mxu0 0
    %747 = vmatprep.subr.bf16.mxu0 0
    %748 = vmatpush1.bf16.msra.mxu0 0
    %749 = vmatprep.subr.bf16.mxu0 0
    %750 = vmatpush1.bf16.msra.mxu0 0
    %751 = vmatprep.subr.bf16.mxu0 0
    %752 = vmatpush1.bf16.msra.mxu0 0
    %753 = vmatprep.subr.bf16.mxu0 0
    %754 = vmatpush1.bf16.msra.mxu0 0
    %755 = vmatprep.subr.bf16.mxu0 0
    %756 = vmatpush1.bf16.msra.mxu0 0
    %757 = vmatprep.subr.bf16.mxu0 0
    %758 = vmatpush1.bf16.msra.mxu0 0
    %759 = vmatprep.subr.bf16.mxu0 0
    %760 = vmatpush1.bf16.msra.mxu0 0
    %761 = vmatprep.subr.bf16.mxu0 0
    %762 = vmatpush1.bf16.msra.mxu0 0
    %763 = vmatprep.subr.bf16.mxu0 0
    %764 = vmatpush1.bf16.msra.mxu0 0
    %765 = vmatprep.subr.bf16.mxu0 0
    %766 = vmatpush1.bf16.msra.mxu0 0
    %767 = vmatprep.mubr.bf16.mxu0 0
    %768 = vmatmul.mubr.bf16.gmra.mrb[0].mxu0 %v733
    %v769 = vpop.f32.mrb[0].mxu0
    %v770 = vadd.f32 0.0, %v769
    %v771 = vpop.f32.mrb[0].mxu0
    %v772 = vpop.f32.mrb[0].mxu0
    %v773 = vpop.f32.mrb[0].mxu0
    %774 = vdwg.mxu0
    %v775 = vadd.f32 %v712, %v770
    %s776 = scalar_lea.vmem %s3, 64
    %v777 = vld [vmem:[%s776] sm:$0xf]
    %v778 = vld [vmem:[%s776 + $0x4] sm:$0xf]
    %v779 = vld [vmem:[%s776 + $0x8] sm:$0xf]
    %v780 = vld [vmem:[%s776 + $0xc] sm:$0xf]
    %v785 = vunpack.c.l.b16 %v777
    %v786 = vunpack.c.l.b16 %v778
    %v787 = vunpack.c.l.b16 %v779
    %v788 = vunpack.c.l.b16 %v780
    %v789 = vpack.c.b16 %v786, %v785
    %v790 = vpack.c.b16 %v788, %v787
    %v794 = vsel %vm323, %v521, 0
    %796 = vmatprep.subr.bf16.mxu0 0
    %797 = vmatpush1.bf16.msra.mxu0 %v789
    %798 = vmatprep.subr.bf16.mxu0 0
    %799 = vmatpush1.bf16.msra.mxu0 %v790
    %800 = vmatprep.subr.bf16.mxu0 0
    %801 = vmatpush1.bf16.msra.mxu0 0
    %802 = vmatprep.subr.bf16.mxu0 0
    %803 = vmatpush1.bf16.msra.mxu0 0
    %804 = vmatprep.subr.bf16.mxu0 0
    %805 = vmatpush1.bf16.msra.mxu0 0
    %806 = vmatprep.subr.bf16.mxu0 0
    %807 = vmatpush1.bf16.msra.mxu0 0
    %808 = vmatprep.subr.bf16.mxu0 0
    %809 = vmatpush1.bf16.msra.mxu0 0
    %810 = vmatprep.subr.bf16.mxu0 0
    %811 = vmatpush1.bf16.msra.mxu0 0
    %812 = vmatprep.subr.bf16.mxu0 0
    %813 = vmatpush1.bf16.msra.mxu0 0
    %814 = vmatprep.subr.bf16.mxu0 0
    %815 = vmatpush1.bf16.msra.mxu0 0
    %816 = vmatprep.subr.bf16.mxu0 0
    %817 = vmatpush1.bf16.msra.mxu0 0
    %818 = vmatprep.subr.bf16.mxu0 0
    %819 = vmatpush1.bf16.msra.mxu0 0
    %820 = vmatprep.subr.bf16.mxu0 0
    %821 = vmatpush1.bf16.msra.mxu0 0
    %822 = vmatprep.subr.bf16.mxu0 0
    %823 = vmatpush1.bf16.msra.mxu0 0
    %824 = vmatprep.subr.bf16.mxu0 0
    %825 = vmatpush1.bf16.msra.mxu0 0
    %826 = vmatprep.subr.bf16.mxu0 0
    %827 = vmatpush1.bf16.msra.mxu0 0
    %828 = vmatprep.mubr.bf16.mxu0 0
    %829 = vmatmul.mubr.bf16.gmra.mrb[0].mxu0 %v794
    %v830 = vpop.f32.mrb[0].mxu0
    %v831 = vadd.f32 0.0, %v830
    %v832 = vpop.f32.mrb[0].mxu0
    %v833 = vpop.f32.mrb[0].mxu0
    %v834 = vpop.f32.mrb[0].mxu0
    %835 = vdwg.mxu0
    %v836 = vadd.f32 %v775, %v831
    %s837 = scalar_lea.vmem %s3, 80
    %v838 = vld [vmem:[%s837] sm:$0xf]
    %v839 = vld [vmem:[%s837 + $0x4] sm:$0xf]
    %v840 = vld [vmem:[%s837 + $0x8] sm:$0xf]
    %v841 = vld [vmem:[%s837 + $0xc] sm:$0xf]
    %v843 = vrot.slane %v521, 4
    %v848 = vunpack.c.l.b16 %v838
    %v849 = vunpack.c.l.b16 %v839
    %v850 = vunpack.c.l.b16 %v840
    %v851 = vunpack.c.l.b16 %v841
    %v852 = vpack.c.b16 %v849, %v848
    %v853 = vpack.c.b16 %v851, %v850
    %v857 = vsel %vm323, %v843, 0
    %859 = vmatprep.subr.bf16.mxu0 0
    %860 = vmatpush1.bf16.msra.mxu0 %v852
    %861 = vmatprep.subr.bf16.mxu0 0
    %862 = vmatpush1.bf16.msra.mxu0 %v853
    %863 = vmatprep.subr.bf16.mxu0 0
    %864 = vmatpush1.bf16.msra.mxu0 0
    %865 = vmatprep.subr.bf16.mxu0 0
    %866 = vmatpush1.bf16.msra.mxu0 0
    %867 = vmatprep.subr.bf16.mxu0 0
    %868 = vmatpush1.bf16.msra.mxu0 0
    %869 = vmatprep.subr.bf16.mxu0 0
    %870 = vmatpush1.bf16.msra.mxu0 0
    %871 = vmatprep.subr.bf16.mxu0 0
    %872 = vmatpush1.bf16.msra.mxu0 0
    %873 = vmatprep.subr.bf16.mxu0 0
    %874 = vmatpush1.bf16.msra.mxu0 0
    %875 = vmatprep.subr.bf16.mxu0 0
    %876 = vmatpush1.bf16.msra.mxu0 0
    %877 = vmatprep.subr.bf16.mxu0 0
    %878 = vmatpush1.bf16.msra.mxu0 0
    %879 = vmatprep.subr.bf16.mxu0 0
    %880 = vmatpush1.bf16.msra.mxu0 0
    %881 = vmatprep.subr.bf16.mxu0 0
    %882 = vmatpush1.bf16.msra.mxu0 0
    %883 = vmatprep.subr.bf16.mxu0 0
    %884 = vmatpush1.bf16.msra.mxu0 0
    %885 = vmatprep.subr.bf16.mxu0 0
    %886 = vmatpush1.bf16.msra.mxu0 0
    %887 = vmatprep.subr.bf16.mxu0 0
    %888 = vmatpush1.bf16.msra.mxu0 0
    %889 = vmatprep.subr.bf16.mxu0 0
    %890 = vmatpush1.bf16.msra.mxu0 0
    %891 = vmatprep.mubr.bf16.mxu0 0
    %892 = vmatmul.mubr.bf16.gmra.mrb[0].mxu0 %v857
    %v893 = vpop.f32.mrb[0].mxu0
    %v894 = vadd.f32 0.0, %v893
    %v895 = vpop.f32.mrb[0].mxu0
    %v896 = vpop.f32.mrb[0].mxu0
    %v897 = vpop.f32.mrb[0].mxu0
    %898 = vdwg.mxu0
    %v899 = vadd.f32 %v836, %v894
    %s900 = scalar_lea.vmem %s3, 96
    %v901 = vld [vmem:[%s900] sm:$0xf]
    %v902 = vld [vmem:[%s900 + $0x4] sm:$0xf]
    %v903 = vld [vmem:[%s900 + $0x8] sm:$0xf]
    %v904 = vld [vmem:[%s900 + $0xc] sm:$0xf]
    %v909 = vunpack.c.l.b16 %v901
    %v910 = vunpack.c.l.b16 %v902
    %v911 = vunpack.c.l.b16 %v903
    %v912 = vunpack.c.l.b16 %v904
    %v913 = vpack.c.b16 %v910, %v909
    %v914 = vpack.c.b16 %v912, %v911
    %v918 = vsel %vm323, %v522, 0
    %920 = vmatprep.subr.bf16.mxu0 0
    %921 = vmatpush1.bf16.msra.mxu0 %v913
    %922 = vmatprep.subr.bf16.mxu0 0
    %923 = vmatpush1.bf16.msra.mxu0 %v914
    %924 = vmatprep.subr.bf16.mxu0 0
    %925 = vmatpush1.bf16.msra.mxu0 0
    %926 = vmatprep.subr.bf16.mxu0 0
    %927 = vmatpush1.bf16.msra.mxu0 0
    %928 = vmatprep.subr.bf16.mxu0 0
    %929 = vmatpush1.bf16.msra.mxu0 0
    %930 = vmatprep.subr.bf16.mxu0 0
    %931 = vmatpush1.bf16.msra.mxu0 0
    %932 = vmatprep.subr.bf16.mxu0 0
    %933 = vmatpush1.bf16.msra.mxu0 0
    %934 = vmatprep.subr.bf16.mxu0 0
    %935 = vmatpush1.bf16.msra.mxu0 0
    %936 = vmatprep.subr.bf16.mxu0 0
    %937 = vmatpush1.bf16.msra.mxu0 0
    %938 = vmatprep.subr.bf16.mxu0 0
    %939 = vmatpush1.bf16.msra.mxu0 0
    %940 = vmatprep.subr.bf16.mxu0 0
    %941 = vmatpush1.bf16.msra.mxu0 0
    %942 = vmatprep.subr.bf16.mxu0 0
    %943 = vmatpush1.bf16.msra.mxu0 0
    %944 = vmatprep.subr.bf16.mxu0 0
    %945 = vmatpush1.bf16.msra.mxu0 0
    %946 = vmatprep.subr.bf16.mxu0 0
    %947 = vmatpush1.bf16.msra.mxu0 0
    %948 = vmatprep.subr.bf16.mxu0 0
    %949 = vmatpush1.bf16.msra.mxu0 0
    %950 = vmatprep.subr.bf16.mxu0 0
    %951 = vmatpush1.bf16.msra.mxu0 0
    %952 = vmatprep.mubr.bf16.mxu0 0
    %953 = vmatmul.mubr.bf16.gmra.mrb[0].mxu0 %v918
    %v954 = vpop.f32.mrb[0].mxu0
    %v955 = vadd.f32 0.0, %v954
    %v956 = vpop.f32.mrb[0].mxu0
    %v957 = vpop.f32.mrb[0].mxu0
    %v958 = vpop.f32.mrb[0].mxu0
    %959 = vdwg.mxu0
    %v960 = vadd.f32 %v899, %v955
    %s961 = scalar_lea.vmem %s3, 112
    %v962 = vld [vmem:[%s961] sm:$0xf]
    %v963 = vld [vmem:[%s961 + $0x4] sm:$0xf]
    %v964 = vld [vmem:[%s961 + $0x8] sm:$0xf]
    %v965 = vld [vmem:[%s961 + $0xc] sm:$0xf]
    %v967 = vrot.slane %v522, 4
    %v972 = vunpack.c.l.b16 %v962
    %v973 = vunpack.c.l.b16 %v963
    %v974 = vunpack.c.l.b16 %v964
    %v975 = vunpack.c.l.b16 %v965
    %v976 = vpack.c.b16 %v973, %v972
    %v977 = vpack.c.b16 %v975, %v974
    %v981 = vsel %vm323, %v967, 0
    %983 = vmatprep.subr.bf16.mxu0 0
    %984 = vmatpush1.bf16.msra.mxu0 %v976
    %985 = vmatprep.subr.bf16.mxu0 0
    %986 = vmatpush1.bf16.msra.mxu0 %v977
    %987 = vmatprep.subr.bf16.mxu0 0
    %988 = vmatpush1.bf16.msra.mxu0 0
    %989 = vmatprep.subr.bf16.mxu0 0
    %990 = vmatpush1.bf16.msra.mxu0 0
    %991 = vmatprep.subr.bf16.mxu0 0
    %992 = vmatpush1.bf16.msra.mxu0 0
    %993 = vmatprep.subr.bf16.mxu0 0
    %994 = vmatpush1.bf16.msra.mxu0 0
    %995 = vmatprep.subr.bf16.mxu0 0
    %996 = vmatpush1.bf16.msra.mxu0 0
    %997 = vmatprep.subr.bf16.mxu0 0
    %998 = vmatpush1.bf16.msra.mxu0 0
    %999 = vmatprep.subr.bf16.mxu0 0
    %1000 = vmatpush1.bf16.msra.mxu0 0
    %1001 = vmatprep.subr.bf16.mxu0 0
    %1002 = vmatpush1.bf16.msra.mxu0 0
    %1003 = vmatprep.subr.bf16.mxu0 0
    %1004 = vmatpush1.bf16.msra.mxu0 0
    %1005 = vmatprep.subr.bf16.mxu0 0
    %1006 = vmatpush1.bf16.msra.mxu0 0
    %1007 = vmatprep.subr.bf16.mxu0 0
    %1008 = vmatpush1.bf16.msra.mxu0 0
    %1009 = vmatprep.subr.bf16.mxu0 0
    %1010 = vmatpush1.bf16.msra.mxu0 0
    %1011 = vmatprep.subr.bf16.mxu0 0
    %1012 = vmatpush1.bf16.msra.mxu0 0
    %1013 = vmatprep.subr.bf16.mxu0 0
    %1014 = vmatpush1.bf16.msra.mxu0 0
    %1015 = vmatprep.mubr.bf16.mxu0 0
    %1016 = vmatmul.mubr.bf16.gmra.mrb[0].mxu0 %v981
    %v1017 = vpop.f32.mrb[0].mxu0
    %v1018 = vadd.f32 0.0, %v1017
    %v1019 = vpop.f32.mrb[0].mxu0
    %v1020 = vpop.f32.mrb[0].mxu0
    %v1021 = vpop.f32.mrb[0].mxu0
    %1022 = vdwg.mxu0
    %v1023 = vadd.f32 %v960, %v1018
    %s1024 = scalar_lea.vmem %s3, 128
    %v1025 = vld [vmem:[%s1024] sm:$0xf]
    %v1026 = vld [vmem:[%s1024 + $0x4] sm:$0xf]
    %v1027 = vld [vmem:[%s1024 + $0x8] sm:$0xf]
    %v1028 = vld [vmem:[%s1024 + $0xc] sm:$0xf]
    %v1033 = vunpack.c.l.b16 %v1025
    %v1034 = vunpack.c.l.b16 %v1026
    %v1035 = vunpack.c.l.b16 %v1027
    %v1036 = vunpack.c.l.b16 %v1028
    %v1037 = vpack.c.b16 %v1034, %v1033
    %v1038 = vpack.c.b16 %v1036, %v1035
    %v1042 = vsel %vm323, %v523, 0
    %1044 = vmatprep.subr.bf16.mxu0 0
    %1045 = vmatpush1.bf16.msra.mxu0 %v1037
    %1046 = vmatprep.subr.bf16.mxu0 0
    %1047 = vmatpush1.bf16.msra.mxu0 %v1038
    %1048 = vmatprep.subr.bf16.mxu0 0
    %1049 = vmatpush1.bf16.msra.mxu0 0
    %1050 = vmatprep.subr.bf16.mxu0 0
    %1051 = vmatpush1.bf16.msra.mxu0 0
    %1052 = vmatprep.subr.bf16.mxu0 0
    %1053 = vmatpush1.bf16.msra.mxu0 0
    %1054 = vmatprep.subr.bf16.mxu0 0
    %1055 = vmatpush1.bf16.msra.mxu0 0
    %1056 = vmatprep.subr.bf16.mxu0 0
    %1057 = vmatpush1.bf16.msra.mxu0 0
    %1058 = vmatprep.subr.bf16.mxu0 0
    %1059 = vmatpush1.bf16.msra.mxu0 0
    %1060 = vmatprep.subr.bf16.mxu0 0
    %1061 = vmatpush1.bf16.msra.mxu0 0
    %1062 = vmatprep.subr.bf16.mxu0 0
    %1063 = vmatpush1.bf16.msra.mxu0 0
    %1064 = vmatprep.subr.bf16.mxu0 0
    %1065 = vmatpush1.bf16.msra.mxu0 0
    %1066 = vmatprep.subr.bf16.mxu0 0
    %1067 = vmatpush1.bf16.msra.mxu0 0
    %1068 = vmatprep.subr.bf16.mxu0 0
    %1069 = vmatpush1.bf16.msra.mxu0 0
    %1070 = vmatprep.subr.bf16.mxu0 0
    %1071 = vmatpush1.bf16.msra.mxu0 0
    %1072 = vmatprep.subr.bf16.mxu0 0
    %1073 = vmatpush1.bf16.msra.mxu0 0
    %1074 = vmatprep.subr.bf16.mxu0 0
    %1075 = vmatpush1.bf16.msra.mxu0 0
    %1076 = vmatprep.mubr.bf16.mxu0 0
    %1077 = vmatmul.mubr.bf16.gmra.mrb[0].mxu0 %v1042
    %v1078 = vpop.f32.mrb[0].mxu0
    %v1079 = vadd.f32 0.0, %v1078
    %v1080 = vpop.f32.mrb[0].mxu0
    %v1081 = vpop.f32.mrb[0].mxu0
    %v1082 = vpop.f32.mrb[0].mxu0
    %1083 = vdwg.mxu0
    %v1084 = vadd.f32 %v1023, %v1079
    %s1085 = scalar_lea.vmem %s3, 144
    %v1086 = vld [vmem:[%s1085] sm:$0xf]
    %v1087 = vld [vmem:[%s1085 + $0x4] sm:$0xf]
    %v1088 = vld [vmem:[%s1085 + $0x8] sm:$0xf]
    %v1089 = vld [vmem:[%s1085 + $0xc] sm:$0xf]
    %v1091 = vrot.slane %v523, 4
    %v1096 = vunpack.c.l.b16 %v1086
    %v1097 = vunpack.c.l.b16 %v1087
    %v1098 = vunpack.c.l.b16 %v1088
    %v1099 = vunpack.c.l.b16 %v1089
    %v1100 = vpack.c.b16 %v1097, %v1096
    %v1101 = vpack.c.b16 %v1099, %v1098
    %v1105 = vsel %vm323, %v1091, 0
    %1107 = vmatprep.subr.bf16.mxu0 0
    %1108 = vmatpush1.bf16.msra.mxu0 %v1100
    %1109 = vmatprep.subr.bf16.mxu0 0
    %1110 = vmatpush1.bf16.msra.mxu0 %v1101
    %1111 = vmatprep.subr.bf16.mxu0 0
    %1112 = vmatpush1.bf16.msra.mxu0 0
    %1113 = vmatprep.subr.bf16.mxu0 0
    %1114 = vmatpush1.bf16.msra.mxu0 0
    %1115 = vmatprep.subr.bf16.mxu0 0
    %1116 = vmatpush1.bf16.msra.mxu0 0
    %1117 = vmatprep.subr.bf16.mxu0 0
    %1118 = vmatpush1.bf16.msra.mxu0 0
    %1119 = vmatprep.subr.bf16.mxu0 0
    %1120 = vmatpush1.bf16.msra.mxu0 0
    %1121 = vmatprep.subr.bf16.mxu0 0
    %1122 = vmatpush1.bf16.msra.mxu0 0
    %1123 = vmatprep.subr.bf16.mxu0 0
    %1124 = vmatpush1.bf16.msra.mxu0 0
    %1125 = vmatprep.subr.bf16.mxu0 0
    %1126 = vmatpush1.bf16.msra.mxu0 0
    %1127 = vmatprep.subr.bf16.mxu0 0
    %1128 = vmatpush1.bf16.msra.mxu0 0
    %1129 = vmatprep.subr.bf16.mxu0 0
    %1130 = vmatpush1.bf16.msra.mxu0 0
    %1131 = vmatprep.subr.bf16.mxu0 0
    %1132 = vmatpush1.bf16.msra.mxu0 0
    %1133 = vmatprep.subr.bf16.mxu0 0
    %1134 = vmatpush1.bf16.msra.mxu0 0
    %1135 = vmatprep.subr.bf16.mxu0 0
    %1136 = vmatpush1.bf16.msra.mxu0 0
    %1137 = vmatprep.subr.bf16.mxu0 0
    %1138 = vmatpush1.bf16.msra.mxu0 0
    %1139 = vmatprep.mubr.bf16.mxu0 0
    %1140 = vmatmul.mubr.bf16.gmra.mrb[0].mxu0 %v1105
    %v1141 = vpop.f32.mrb[0].mxu0
    %v1142 = vadd.f32 0.0, %v1141
    %v1143 = vpop.f32.mrb[0].mxu0
    %v1144 = vpop.f32.mrb[0].mxu0
    %v1145 = vpop.f32.mrb[0].mxu0
    %1146 = vdwg.mxu0
    %v1147 = vadd.f32 %v1084, %v1142
    %s1148 = scalar_lea.vmem %s3, 160
    %v1149 = vld [vmem:[%s1148] sm:$0xf]
    %v1150 = vld [vmem:[%s1148 + $0x4] sm:$0xf]
    %v1151 = vld [vmem:[%s1148 + $0x8] sm:$0xf]
    %v1152 = vld [vmem:[%s1148 + $0xc] sm:$0xf]
    %v1157 = vunpack.c.l.b16 %v1149
    %v1158 = vunpack.c.l.b16 %v1150
    %v1159 = vunpack.c.l.b16 %v1151
    %v1160 = vunpack.c.l.b16 %v1152
    %v1161 = vpack.c.b16 %v1158, %v1157
    %v1162 = vpack.c.b16 %v1160, %v1159
    %v1166 = vsel %vm323, %v524, 0
    %1168 = vmatprep.subr.bf16.mxu0 0
    %1169 = vmatpush1.bf16.msra.mxu0 %v1161
    %1170 = vmatprep.subr.bf16.mxu0 0
    %1171 = vmatpush1.bf16.msra.mxu0 %v1162
    %1172 = vmatprep.subr.bf16.mxu0 0
    %1173 = vmatpush1.bf16.msra.mxu0 0
    %1174 = vmatprep.subr.bf16.mxu0 0
    %1175 = vmatpush1.bf16.msra.mxu0 0
    %1176 = vmatprep.subr.bf16.mxu0 0
    %1177 = vmatpush1.bf16.msra.mxu0 0
    %1178 = vmatprep.subr.bf16.mxu0 0
    %1179 = vmatpush1.bf16.msra.mxu0 0
    %1180 = vmatprep.subr.bf16.mxu0 0
    %1181 = vmatpush1.bf16.msra.mxu0 0
    %1182 = vmatprep.subr.bf16.mxu0 0
    %1183 = vmatpush1.bf16.msra.mxu0 0
    %1184 = vmatprep.subr.bf16.mxu0 0
    %1185 = vmatpush1.bf16.msra.mxu0 0
    %1186 = vmatprep.subr.bf16.mxu0 0
    %1187 = vmatpush1.bf16.msra.mxu0 0
    %1188 = vmatprep.subr.bf16.mxu0 0
    %1189 = vmatpush1.bf16.msra.mxu0 0
    %1190 = vmatprep.subr.bf16.mxu0 0
    %1191 = vmatpush1.bf16.msra.mxu0 0
    %1192 = vmatprep.subr.bf16.mxu0 0
    %1193 = vmatpush1.bf16.msra.mxu0 0
    %1194 = vmatprep.subr.bf16.mxu0 0
    %1195 = vmatpush1.bf16.msra.mxu0 0
    %1196 = vmatprep.subr.bf16.mxu0 0
    %1197 = vmatpush1.bf16.msra.mxu0 0
    %1198 = vmatprep.subr.bf16.mxu0 0
    %1199 = vmatpush1.bf16.msra.mxu0 0
    %1200 = vmatprep.mubr.bf16.mxu0 0
    %1201 = vmatmul.mubr.bf16.gmra.mrb[0].mxu0 %v1166
    %v1202 = vpop.f32.mrb[0].mxu0
    %v1203 = vadd.f32 0.0, %v1202
    %v1204 = vpop.f32.mrb[0].mxu0
    %v1205 = vpop.f32.mrb[0].mxu0
    %v1206 = vpop.f32.mrb[0].mxu0
    %1207 = vdwg.mxu0
    %v1208 = vadd.f32 %v1147, %v1203
    %s1209 = scalar_lea.vmem %s3, 176
    %v1210 = vld [vmem:[%s1209] sm:$0xf]
    %v1211 = vld [vmem:[%s1209 + $0x4] sm:$0xf]
    %v1212 = vld [vmem:[%s1209 + $0x8] sm:$0xf]
    %v1213 = vld [vmem:[%s1209 + $0xc] sm:$0xf]
    %v1215 = vrot.slane %v524, 4
    %v1220 = vunpack.c.l.b16 %v1210
    %v1221 = vunpack.c.l.b16 %v1211
    %v1222 = vunpack.c.l.b16 %v1212
    %v1223 = vunpack.c.l.b16 %v1213
    %v1224 = vpack.c.b16 %v1221, %v1220
    %v1225 = vpack.c.b16 %v1223, %v1222
    %v1229 = vsel %vm323, %v1215, 0
    %1231 = vmatprep.subr.bf16.mxu0 0
    %1232 = vmatpush1.bf16.msra.mxu0 %v1224
    %1233 = vmatprep.subr.bf16.mxu0 0
    %1234 = vmatpush1.bf16.msra.mxu0 %v1225
    %1235 = vmatprep.subr.bf16.mxu0 0
    %1236 = vmatpush1.bf16.msra.mxu0 0
    %1237 = vmatprep.subr.bf16.mxu0 0
    %1238 = vmatpush1.bf16.msra.mxu0 0
    %1239 = vmatprep.subr.bf16.mxu0 0
    %1240 = vmatpush1.bf16.msra.mxu0 0
    %1241 = vmatprep.subr.bf16.mxu0 0
    %1242 = vmatpush1.bf16.msra.mxu0 0
    %1243 = vmatprep.subr.bf16.mxu0 0
    %1244 = vmatpush1.bf16.msra.mxu0 0
    %1245 = vmatprep.subr.bf16.mxu0 0
    %1246 = vmatpush1.bf16.msra.mxu0 0
    %1247 = vmatprep.subr.bf16.mxu0 0
    %1248 = vmatpush1.bf16.msra.mxu0 0
    %1249 = vmatprep.subr.bf16.mxu0 0
    %1250 = vmatpush1.bf16.msra.mxu0 0
    %1251 = vmatprep.subr.bf16.mxu0 0
    %1252 = vmatpush1.bf16.msra.mxu0 0
    %1253 = vmatprep.subr.bf16.mxu0 0
    %1254 = vmatpush1.bf16.msra.mxu0 0
    %1255 = vmatprep.subr.bf16.mxu0 0
    %1256 = vmatpush1.bf16.msra.mxu0 0
    %1257 = vmatprep.subr.bf16.mxu0 0
    %1258 = vmatpush1.bf16.msra.mxu0 0
    %1259 = vmatprep.subr.bf16.mxu0 0
    %1260 = vmatpush1.bf16.msra.mxu0 0
    %1261 = vmatprep.subr.bf16.mxu0 0
    %1262 = vmatpush1.bf16.msra.mxu0 0
    %1263 = vmatprep.mubr.bf16.mxu0 0
    %1264 = vmatmul.mubr.bf16.gmra.mrb[0].mxu0 %v1229
    %v1265 = vpop.f32.mrb[0].mxu0
    %v1266 = vadd.f32 0.0, %v1265
    %v1267 = vpop.f32.mrb[0].mxu0
    %v1268 = vpop.f32.mrb[0].mxu0
    %v1269 = vpop.f32.mrb[0].mxu0
    %1270 = vdwg.mxu0
    %v1271 = vadd.f32 %v1208, %v1266
    %v1272 = vmax.f32 %v1271, 0.0
    %v1273 = vpack.c.bf16 %v1272, %v1272
    %v1274 = vld [vmem:[%s4] sm:$0xf]
    %v1275 = vld [vmem:[%s4 + $0x4] sm:$0xf]
    %v1276 = vld [vmem:[%s4 + $0x8] sm:$0xf]
    %v1277 = vld [vmem:[%s4 + $0xc] sm:$0xf]
    %v1278 = vld [vmem:[%s4 + $0x10] sm:$0xf]
    %v1279 = vld [vmem:[%s4 + $0x14] sm:$0xf]
    %v1280 = vld [vmem:[%s4 + $0x18] sm:$0xf]
    %v1281 = vld [vmem:[%s4 + $0x1c] sm:$0xf]
    %v1282 = vld [vmem:[%s4 + $0x20] sm:$0xf]
    %v1283 = vld [vmem:[%s4 + $0x24] sm:$0xf]
    %v1284 = vld [vmem:[%s4 + $0x28] sm:$0xf]
    %v1285 = vld [vmem:[%s4 + $0x2c] sm:$0xf]
    %v1286 = vld [vmem:[%s4 + $0x30] sm:$0xf]
    %v1287 = vld [vmem:[%s4 + $0x34] sm:$0xf]
    %v1288 = vld [vmem:[%s4 + $0x38] sm:$0xf]
    %v1289 = vld [vmem:[%s4 + $0x3c] sm:$0xf]
    %v1290 = vlaneseq
    %v1291 = vshrl.u32 %v1290, 7
    %v1292 = vsub.s32 1, %v1291
    %v1293 = vrot.slane %v28, %v1292
    %v1310 = vunpack.c.l.b16 %v1274
    %v1311 = vunpack.c.l.b16 %v1275
    %v1312 = vunpack.c.l.b16 %v1276
    %v1313 = vunpack.c.l.b16 %v1277
    %v1314 = vunpack.c.l.b16 %v1278
    %v1315 = vunpack.c.l.b16 %v1279
    %v1316 = vunpack.c.l.b16 %v1280
    %v1317 = vunpack.c.l.b16 %v1281
    %v1318 = vunpack.c.l.b16 %v1282
    %v1319 = vunpack.c.l.b16 %v1283
    %v1320 = vunpack.c.l.b16 %v1284
    %v1321 = vunpack.c.l.b16 %v1285
    %v1322 = vunpack.c.l.b16 %v1286
    %v1323 = vunpack.c.l.b16 %v1287
    %v1324 = vunpack.c.l.b16 %v1288
    %v1325 = vunpack.c.l.b16 %v1289
    %v1326 = vpack.c.b16 %v1311, %v1310
    %v1327 = vpack.c.b16 %v1313, %v1312
    %v1328 = vpack.c.b16 %v1315, %v1314
    %v1329 = vpack.c.b16 %v1317, %v1316
    %v1330 = vpack.c.b16 %v1319, %v1318
    %v1331 = vpack.c.b16 %v1321, %v1320
    %v1332 = vpack.c.b16 %v1323, %v1322
    %v1333 = vpack.c.b16 %v1325, %v1324
    %1342 = vmatprep.subr.bf16.mxu0 0
    %1343 = vmatpush1.bf16.msra.mxu0 %v1326
    %1344 = vmatprep.subr.bf16.mxu0 0
    %1345 = vmatpush1.bf16.msra.mxu0 %v1327
    %1346 = vmatprep.subr.bf16.mxu0 0
    %1347 = vmatpush1.bf16.msra.mxu0 %v1328
    %1348 = vmatprep.subr.bf16.mxu0 0
    %1349 = vmatpush1.bf16.msra.mxu0 %v1329
    %1350 = vmatprep.subr.bf16.mxu0 0
    %1351 = vmatpush1.bf16.msra.mxu0 %v1330
    %1352 = vmatprep.subr.bf16.mxu0 0
    %1353 = vmatpush1.bf16.msra.mxu0 %v1331
    %1354 = vmatprep.subr.bf16.mxu0 0
    %1355 = vmatpush1.bf16.msra.mxu0 %v1332
    %1356 = vmatprep.subr.bf16.mxu0 0
    %1357 = vmatpush1.bf16.msra.mxu0 %v1333
    %1358 = vmatprep.subr.bf16.mxu0 0
    %1359 = vmatpush1.bf16.msra.mxu0 0
    %1360 = vmatprep.subr.bf16.mxu0 0
    %1361 = vmatpush1.bf16.msra.mxu0 0
    %1362 = vmatprep.subr.bf16.mxu0 0
    %1363 = vmatpush1.bf16.msra.mxu0 0
    %1364 = vmatprep.subr.bf16.mxu0 0
    %1365 = vmatpush1.bf16.msra.mxu0 0
    %1366 = vmatprep.subr.bf16.mxu0 0
    %1367 = vmatpush1.bf16.msra.mxu0 0
    %1368 = vmatprep.subr.bf16.mxu0 0
    %1369 = vmatpush1.bf16.msra.mxu0 0
    %1370 = vmatprep.subr.bf16.mxu0 0
    %1371 = vmatpush1.bf16.msra.mxu0 0
    %1372 = vmatprep.subr.bf16.mxu0 0
    %1373 = vmatpush1.bf16.msra.mxu0 0
    %1374 = vmatprep.mubr.bf16.mxu0 0
    %1375 = vmatmul.mubr.bf16.gmra.mrb[0].mxu0 %v1273
    %v1376 = vpop.f32.mrb[0].mxu0
    %v1377 = vadd.f32 %v1293, %v1376
    %v1378 = vpop.f32.mrb[0].mxu0
    %v1379 = vpop.f32.mrb[0].mxu0
    %v1380 = vpop.f32.mrb[0].mxu0
    %1381 = vdwg.mxu0
    %v1382 = vmax.f32 %v1377, 0.0
    %v1383 = vpack.c.bf16 %v1382, %v1382
    %s1384 = scalar_lea.vmem %s4, 64
    %v1385 = vld [vmem:[%s1384] sm:$0xf]
    %v1386 = vld [vmem:[%s1384 + $0x4] sm:$0xf]
    %v1387 = vld [vmem:[%s1384 + $0x8] sm:$0xf]
    %v1388 = vld [vmem:[%s1384 + $0xc] sm:$0xf]
    %v1389 = vld [vmem:[%s1384 + $0x10] sm:$0xf]
    %v1390 = vld [vmem:[%s1384 + $0x14] sm:$0xf]
    %v1391 = vld [vmem:[%s1384 + $0x18] sm:$0xf]
    %v1392 = vld [vmem:[%s1384 + $0x1c] sm:$0xf]
    %v1393 = vld [vmem:[%s1384 + $0x20] sm:$0xf]
    %v1394 = vld [vmem:[%s1384 + $0x24] sm:$0xf]
    %v1395 = vld [vmem:[%s1384 + $0x28] sm:$0xf]
    %v1396 = vld [vmem:[%s1384 + $0x2c] sm:$0xf]
    %v1397 = vld [vmem:[%s1384 + $0x30] sm:$0xf]
    %v1398 = vld [vmem:[%s1384 + $0x34] sm:$0xf]
    %v1399 = vld [vmem:[%s1384 + $0x38] sm:$0xf]
    %v1400 = vld [vmem:[%s1384 + $0x3c] sm:$0xf]
    %v1401 = vlaneseq
    %v1402 = vshrl.u32 %v1401, 7
    %v1403 = vsub.s32 2, %v1402
    %v1404 = vrot.slane %v28, %v1403
    %v1421 = vunpack.c.l.b16 %v1385
    %v1422 = vunpack.c.l.b16 %v1386
    %v1423 = vunpack.c.l.b16 %v1387
    %v1424 = vunpack.c.l.b16 %v1388
    %v1425 = vunpack.c.l.b16 %v1389
    %v1426 = vunpack.c.l.b16 %v1390
    %v1427 = vunpack.c.l.b16 %v1391
    %v1428 = vunpack.c.l.b16 %v1392
    %v1429 = vunpack.c.l.b16 %v1393
    %v1430 = vunpack.c.l.b16 %v1394
    %v1431 = vunpack.c.l.b16 %v1395
    %v1432 = vunpack.c.l.b16 %v1396
    %v1433 = vunpack.c.l.b16 %v1397
    %v1434 = vunpack.c.l.b16 %v1398
    %v1435 = vunpack.c.l.b16 %v1399
    %v1436 = vunpack.c.l.b16 %v1400
    %v1437 = vpack.c.b16 %v1422, %v1421
    %v1438 = vpack.c.b16 %v1424, %v1423
    %v1439 = vpack.c.b16 %v1426, %v1425
    %v1440 = vpack.c.b16 %v1428, %v1427
    %v1441 = vpack.c.b16 %v1430, %v1429
    %v1442 = vpack.c.b16 %v1432, %v1431
    %v1443 = vpack.c.b16 %v1434, %v1433
    %v1444 = vpack.c.b16 %v1436, %v1435
    %1453 = vmatprep.subr.bf16.mxu0 0
    %1454 = vmatpush1.bf16.msra.mxu0 %v1437
    %1455 = vmatprep.subr.bf16.mxu0 0
    %1456 = vmatpush1.bf16.msra.mxu0 %v1438
    %1457 = vmatprep.subr.bf16.mxu0 0
    %1458 = vmatpush1.bf16.msra.mxu0 %v1439
    %1459 = vmatprep.subr.bf16.mxu0 0
    %1460 = vmatpush1.bf16.msra.mxu0 %v1440
    %1461 = vmatprep.subr.bf16.mxu0 0
    %1462 = vmatpush1.bf16.msra.mxu0 %v1441
    %1463 = vmatprep.subr.bf16.mxu0 0
    %1464 = vmatpush1.bf16.msra.mxu0 %v1442
    %1465 = vmatprep.subr.bf16.mxu0 0
    %1466 = vmatpush1.bf16.msra.mxu0 %v1443
    %1467 = vmatprep.subr.bf16.mxu0 0
    %1468 = vmatpush1.bf16.msra.mxu0 %v1444
    %1469 = vmatprep.subr.bf16.mxu0 0
    %1470 = vmatpush1.bf16.msra.mxu0 0
    %1471 = vmatprep.subr.bf16.mxu0 0
    %1472 = vmatpush1.bf16.msra.mxu0 0
    %1473 = vmatprep.subr.bf16.mxu0 0
    %1474 = vmatpush1.bf16.msra.mxu0 0
    %1475 = vmatprep.subr.bf16.mxu0 0
    %1476 = vmatpush1.bf16.msra.mxu0 0
    %1477 = vmatprep.subr.bf16.mxu0 0
    %1478 = vmatpush1.bf16.msra.mxu0 0
    %1479 = vmatprep.subr.bf16.mxu0 0
    %1480 = vmatpush1.bf16.msra.mxu0 0
    %1481 = vmatprep.subr.bf16.mxu0 0
    %1482 = vmatpush1.bf16.msra.mxu0 0
    %1483 = vmatprep.subr.bf16.mxu0 0
    %1484 = vmatpush1.bf16.msra.mxu0 0
    %1485 = vmatprep.mubr.bf16.mxu0 0
    %1486 = vmatmul.mubr.bf16.gmra.mrb[0].mxu0 %v1383
    %v1487 = vpop.f32.mrb[0].mxu0
    %v1488 = vadd.f32 %v1404, %v1487
    %v1489 = vpop.f32.mrb[0].mxu0
    %v1490 = vpop.f32.mrb[0].mxu0
    %v1491 = vpop.f32.mrb[0].mxu0
    %1492 = vdwg.mxu0
    %v1493 = vmax.f32 %v1488, 0.0
    %v1494 = vpack.c.bf16 %v1493, %v1493
    %s1495 = scalar_lea.vmem %s4, 128
    %v1496 = vld [vmem:[%s1495] sm:$0xf]
    %v1497 = vld [vmem:[%s1495 + $0x4] sm:$0xf]
    %v1498 = vld [vmem:[%s1495 + $0x8] sm:$0xf]
    %v1499 = vld [vmem:[%s1495 + $0xc] sm:$0xf]
    %v1500 = vld [vmem:[%s1495 + $0x10] sm:$0xf]
    %v1501 = vld [vmem:[%s1495 + $0x14] sm:$0xf]
    %v1502 = vld [vmem:[%s1495 + $0x18] sm:$0xf]
    %v1503 = vld [vmem:[%s1495 + $0x1c] sm:$0xf]
    %v1504 = vld [vmem:[%s1495 + $0x20] sm:$0xf]
    %v1505 = vld [vmem:[%s1495 + $0x24] sm:$0xf]
    %v1506 = vld [vmem:[%s1495 + $0x28] sm:$0xf]
    %v1507 = vld [vmem:[%s1495 + $0x2c] sm:$0xf]
    %v1508 = vld [vmem:[%s1495 + $0x30] sm:$0xf]
    %v1509 = vld [vmem:[%s1495 + $0x34] sm:$0xf]
    %v1510 = vld [vmem:[%s1495 + $0x38] sm:$0xf]
    %v1511 = vld [vmem:[%s1495 + $0x3c] sm:$0xf]
    %v1512 = vlaneseq
    %v1513 = vshrl.u32 %v1512, 7
    %v1514 = vsub.s32 3, %v1513
    %v1515 = vrot.slane %v28, %v1514
    %v1532 = vunpack.c.l.b16 %v1496
    %v1533 = vunpack.c.l.b16 %v1497
    %v1534 = vunpack.c.l.b16 %v1498
    %v1535 = vunpack.c.l.b16 %v1499
    %v1536 = vunpack.c.l.b16 %v1500
    %v1537 = vunpack.c.l.b16 %v1501
    %v1538 = vunpack.c.l.b16 %v1502
    %v1539 = vunpack.c.l.b16 %v1503
    %v1540 = vunpack.c.l.b16 %v1504
    %v1541 = vunpack.c.l.b16 %v1505
    %v1542 = vunpack.c.l.b16 %v1506
    %v1543 = vunpack.c.l.b16 %v1507
    %v1544 = vunpack.c.l.b16 %v1508
    %v1545 = vunpack.c.l.b16 %v1509
    %v1546 = vunpack.c.l.b16 %v1510
    %v1547 = vunpack.c.l.b16 %v1511
    %v1548 = vpack.c.b16 %v1533, %v1532
    %v1549 = vpack.c.b16 %v1535, %v1534
    %v1550 = vpack.c.b16 %v1537, %v1536
    %v1551 = vpack.c.b16 %v1539, %v1538
    %v1552 = vpack.c.b16 %v1541, %v1540
    %v1553 = vpack.c.b16 %v1543, %v1542
    %v1554 = vpack.c.b16 %v1545, %v1544
    %v1555 = vpack.c.b16 %v1547, %v1546
    %1564 = vmatprep.subr.bf16.mxu0 0
    %1565 = vmatpush1.bf16.msra.mxu0 %v1548
    %1566 = vmatprep.subr.bf16.mxu0 0
    %1567 = vmatpush1.bf16.msra.mxu0 %v1549
    %1568 = vmatprep.subr.bf16.mxu0 0
    %1569 = vmatpush1.bf16.msra.mxu0 %v1550
    %1570 = vmatprep.subr.bf16.mxu0 0
    %1571 = vmatpush1.bf16.msra.mxu0 %v1551
    %1572 = vmatprep.subr.bf16.mxu0 0
    %1573 = vmatpush1.bf16.msra.mxu0 %v1552
    %1574 = vmatprep.subr.bf16.mxu0 0
    %1575 = vmatpush1.bf16.msra.mxu0 %v1553
    %1576 = vmatprep.subr.bf16.mxu0 0
    %1577 = vmatpush1.bf16.msra.mxu0 %v1554
    %1578 = vmatprep.subr.bf16.mxu0 0
    %1579 = vmatpush1.bf16.msra.mxu0 %v1555
    %1580 = vmatprep.subr.bf16.mxu0 0
    %1581 = vmatpush1.bf16.msra.mxu0 0
    %1582 = vmatprep.subr.bf16.mxu0 0
    %1583 = vmatpush1.bf16.msra.mxu0 0
    %1584 = vmatprep.subr.bf16.mxu0 0
    %1585 = vmatpush1.bf16.msra.mxu0 0
    %1586 = vmatprep.subr.bf16.mxu0 0
    %1587 = vmatpush1.bf16.msra.mxu0 0
    %1588 = vmatprep.subr.bf16.mxu0 0
    %1589 = vmatpush1.bf16.msra.mxu0 0
    %1590 = vmatprep.subr.bf16.mxu0 0
    %1591 = vmatpush1.bf16.msra.mxu0 0
    %1592 = vmatprep.subr.bf16.mxu0 0
    %1593 = vmatpush1.bf16.msra.mxu0 0
    %1594 = vmatprep.subr.bf16.mxu0 0
    %1595 = vmatpush1.bf16.msra.mxu0 0
    %1596 = vmatprep.mubr.bf16.mxu0 0
    %1597 = vmatmul.mubr.bf16.gmra.mrb[0].mxu0 %v1494
    %v1598 = vpop.f32.mrb[0].mxu0
    %v1599 = vadd.f32 %v1515, %v1598
    %v1600 = vpop.f32.mrb[0].mxu0
    %v1601 = vpop.f32.mrb[0].mxu0
    %v1602 = vpop.f32.mrb[0].mxu0
    %1603 = vdwg.mxu0
    %vm1604 = vcmask 48128
    %1605 = vst.msk [vmem:[#allocation2] sm:$0xff] %vm1604, %v1599
    // Predicated region
    $region26: #{qnetwork_forward.1} parent=1 // pred_check
      _
    $region27: #{qnetwork_forward.1} parent=1 // pred_check_branch
      %1607 = sbr.rel (0) target = $region29
    $region28: #{qnetwork_forward.1} parent=1 // pred_region
      %s1609 = ssub.s32 128, 128
      %1610 = vsyncadd [#allocation3], %s1609
      %s1612 = sshll.u32 [#allocation2], 4
      %s1613 = int_to_ptr.vmem [resolvable:$true] %s1612
      %1615 = dma.vmem_to_hbm [thread:$0]  %s1613, 128, %s6, [#allocation3]
    $region29: #{qnetwork_forward.1} parent=1 // pred_fallthru
      _
    // Predicated region
    $region30: #{qnetwork_forward.1} parent=1 // pred_check
      _
    $region31: #{qnetwork_forward.1} parent=1 // pred_check_branch
      %1617 = sbr.rel (0) target = $region33
    $region32: #{qnetwork_forward.1} parent=1 // pred_region
      %1618 = dma.done [#allocation3], 128
    $region33: #{qnetwork_forward.1} parent=1 // pred_fallthru
      _
    %1619 = vsyncpa [#allocation3], 1

</llo_original>
